<compile_context>
chip_gen: v6e
topology: v6e:2x2x1
jax: 0.10.0
libtpu: 0.0.40
codegen_flags: <defaults>
</compile_context>

<pallas_src>
import functools

import jax
import jax.numpy as jnp
from jax.experimental import pallas as pl
from jax.experimental.pallas import tpu as pltpu


# ----------------------- fused bidirectional GRU layer kernel -----------------------

def _bigru_layer_kernel(gi_ref, w_hh_ref, b_hh_n_ref, out_ref):
    """One full bidirectional GRU layer; both directions advance lockstep.

    gi_ref    : [2, 3, T, B, H] f32  input-side gate pre-activations (r,z,n), biases folded
    w_hh_ref  : [2, H, 3H]      bf16 fused recurrent weights (gate order r,z,n)
    b_hh_n_ref: [2, 1, H]       f32  recurrent bias of the candidate gate (needs reset gate)
    out_ref   : [2, T, B, H]    f32  all hidden states, direction-major, natural time order
    """
    _, T, B, H = out_ref.shape

    # Hoisted once: recurrent weights / candidate bias per direction.
    w_f = w_hh_ref[0]          # [H, 3H] bf16
    w_b = w_hh_ref[1]
    bn_f = b_hh_n_ref[0]       # [1, H], broadcasts over batch
    bn_b = b_hh_n_ref[1]

    def gru_cell(h, gr, gz, gn, w, bn):
        # Single fused MXU push per step: [B, H] @ [H, 3H] (bf16 in, f32 accumulate).
        gh = jnp.dot(h.astype(jnp.bfloat16), w, preferred_element_type=jnp.float32)
        r = jax.nn.sigmoid(gr + gh[:, :H])
        z = jax.nn.sigmoid(gz + gh[:, H:2 * H])
        n = jnp.tanh(gn + r * (gh[:, 2 * H:] + bn))
        return (1.0 - z) * n + z * h

    def step(s, carry):
        h_f, h_b = carry
        tb = T - 1 - s   # backward direction walks time in reverse (== flip/unflip)
        h_f = gru_cell(h_f, gi_ref[0, 0, s], gi_ref[0, 1, s], gi_ref[0, 2, s], w_f, bn_f)
        h_b = gru_cell(h_b, gi_ref[1, 0, tb], gi_ref[1, 1, tb], gi_ref[1, 2, tb], w_b, bn_b)
        out_ref[0, s] = h_f
        out_ref[1, tb] = h_b
        return (h_f, h_b)

    h0 = jnp.zeros((B, H), jnp.float32)   # PyTorch default zero initial state
    jax.lax.fori_loop(0, T, step, (h0, h0), unroll=min(T, 8))


def run_bigru_layer(gi, w_hh_cat, b_hh_n):
    """gi: [2,3,T,B,H] f32; w_hh_cat: [2,H,3H] bf16; b_hh_n: [2,1,H] f32 -> [2,T,B,H] f32."""
    _, _, T, B, H = gi.shape
    # TODO(synk): at production sizes add a time-tile grid axis ("arbitrary") with
    # (h_fwd, h_bwd) carried in VMEM scratch, move the backward reversal into the
    # index_map (time block = n_blocks-1-k), keep gi in bf16 and set vmem_limit_bytes
    # so the working set fits v7x's 64 MiB VMEM; at these shapes the whole sequence is
    # VMEM-resident and grid=() avoids all per-step pipeline overhead.
    return pl.pallas_call(
        _bigru_layer_kernel,
        out_shape=jax.ShapeDtypeStruct((2, T, B, H), jnp.float32),
        in_specs=[
            pl.BlockSpec(memory_space=pltpu.MemorySpace.VMEM),   # gi
            pl.BlockSpec(memory_space=pltpu.MemorySpace.VMEM),   # w_hh_cat
            pl.BlockSpec(memory_space=pltpu.MemorySpace.VMEM),   # b_hh_n
        ],
        out_specs=pl.BlockSpec(memory_space=pltpu.MemorySpace.VMEM),
    )(gi, w_hh_cat, b_hh_n)


# ----------------------- hoisted input projections (XLA glue) -----------------------

def _input_proj_dense(x_tbf, w_ih, b_fold):
    """First layer. x_tbf: [T,B,F]; w_ih: [2,3,F,H]; b_fold: [2,3,H] -> gi [2,3,T,B,H]."""
    gi = jnp.einsum("tbf,dgfh->dgtbh",
                    x_tbf.astype(jnp.bfloat16), w_ih.astype(jnp.bfloat16),
                    preferred_element_type=jnp.float32)
    return gi + b_fold[:, :, None, None, :]


def _input_proj_bidir(x_etbh, w_ih, b_fold):
    """Layers >= 1. x_etbh: [2,T,B,H] direction-major previous-layer output;
    w_ih: [2,3,2H,H]. One einsum contracting (input-direction, H) — no concat copy."""
    h_in = x_etbh.shape[-1]
    h_out = w_ih.shape[-1]
    w = w_ih.reshape(2, 3, 2, h_in, h_out)
    gi = jnp.einsum("etbx,dgexh->dgtbh",
                    x_etbh.astype(jnp.bfloat16), w.astype(jnp.bfloat16),
                    preferred_element_type=jnp.float32)
    return gi + b_fold[:, :, None, None, :]


# --------------------------------- Encoder forward ----------------------------------

def encoder_forward(params, token_seq, num_layers=2, state_type="concat"):
    """Mirrors Encoder.forward. token_seq: [B, T] int32 -> (hidden, outputs)."""
    emb = jnp.take(params["embedding"], token_seq, axis=0)       # [B, T, E]
    B = token_seq.shape[0]
    x = jnp.transpose(emb, (1, 0, 2)).astype(jnp.float32)        # [T, B, E]

    # Sublane padding: batch -> multiple of 8. Padded rows are independent garbage and
    # are dropped at the end. (Production: also pad H=250 -> 256, a multiple of 128.)
    Bp = ((B + 7) // 8) * 8
    if Bp != B:
        x = jnp.pad(x, ((0, 0), (0, Bp - B), (0, 0)))

    H = params["gru"][0]["w_hh"].shape[-1]
    out = None
    h_n = []   # final states per (layer, direction), torch h_n ordering
    for layer in range(num_layers):
        p = params["gru"][layer]
        # Fold b_ih (all gates) + b_hh for r/z into the hoisted projection; b_hh_n stays
        # separate because it is multiplied by the reset gate inside the recurrence.
        b_fold = p["b_ih"] + p["b_hh"].at[:, 2, :].set(0.0)       # [2, 3, H]
        if layer == 0:
            gi = _input_proj_dense(x, p["w_ih"], b_fold)
        else:
            gi = _input_proj_bidir(out, p["w_ih"], b_fold)
        # Pack recurrent weights gate-fused: [2,3,H,H] -> [2, H, 3H], bf16 for the MXU.
        w_hh_cat = (jnp.transpose(p["w_hh"], (0, 2, 1, 3))
                    .reshape(2, H, 3 * H).astype(jnp.bfloat16))
        b_hh_n = p["b_hh"][:, 2:3, :]                              # [2, 1, H]
        out = run_bigru_layer(gi, w_hh_cat, b_hh_n)                # [2, T, Bp, H]
        T = out.shape[1]
        h_n.append(out[0, T - 1, :B])   # forward final state
        h_n.append(out[1, 0, :B])       # backward final state (its last step is t=0)

    out = out[:, :, :B, :]                                         # drop batch padding
    # Single concat at the module boundary only (this IS the returned tensor).
    outputs = jnp.transpose(jnp.concatenate([out[0], out[1]], axis=-1), (1, 0, 2))  # [B,T,2H]

    if state_type == "concat":
        hidden = outputs[:, -1, :]      # as in the source module (not torch h_n for bwd)
    elif state_type == "add":
        # Source module: torch.sum(h_n, dim=0); outputs[..., :250] + outputs[..., 250:]
        # (250 hard-coded in the source == hidden_dim; generalized here).
        hidden = jnp.sum(jnp.stack(h_n, axis=0), axis=0)
        outputs = outputs[..., :H] + outputs[..., H:]
    else:
        raise ValueError("state_type must be 'concat' or 'add'")
    return hidden, outputs


# --------------------------- pure-JAX reference (for check) -------------------------

def _gru_dir_ref(x_tbf, w_ih_d, w_hh_d, b_ih_d, b_hh_d, reverse):
    """Per-direction GRU via lax.scan. w_ih_d: [3,F,H]; w_hh_d: [3,H,H]; b_*: [3,H].
    Matmul operands cast to bf16 (f32 accumulation) to match the kernel's MXU numerics."""
    H = w_hh_d.shape[-1]
    w_ih_b = w_ih_d.astype(jnp.bfloat16)
    w_hh_b = w_hh_d.astype(jnp.bfloat16)

    def step(h, x):
        hb = h.astype(jnp.bfloat16)
        gi = [jnp.dot(x, w_ih_b[g], preferred_element_type=jnp.float32) + b_ih_d[g]
              for g in range(3)]
        gh = [jnp.dot(hb, w_hh_b[g], preferred_element_type=jnp.float32) + b_hh_d[g]
              for g in range(3)]
        r = jax.nn.sigmoid(gi[0] + gh[0])
        z = jax.nn.sigmoid(gi[1] + gh[1])
        n = jnp.tanh(gi[2] + r * gh[2])
        h_new = (1.0 - z) * n + z * h
        return h_new, h_new

    h0 = jnp.zeros((x_tbf.shape[1], H), jnp.float32)
    xs = x_tbf.astype(jnp.bfloat16)
    xs = jnp.flip(xs, axis=0) if reverse else xs
    _, outs = jax.lax.scan(step, h0, xs)
    return jnp.flip(outs, axis=0) if reverse else outs


def encoder_forward_ref(params, token_seq, num_layers=2):
    emb = jnp.take(params["embedding"], token_seq, axis=0)
    x = jnp.transpose(emb, (1, 0, 2)).astype(jnp.float32)
    for layer in range(num_layers):
        p = params["gru"][layer]
        outs = [
            _gru_dir_ref(x, p["w_ih"][d], p["w_hh"][d], p["b_ih"][d], p["b_hh"][d],
                         reverse=(d == 1))
            for d in range(2)
        ]
        x = jnp.concatenate(outs, axis=-1)
    outputs = jnp.transpose(x, (1, 0, 2))
    return outputs[:, -1, :], outputs


# ------------------------------------ params ----------------------------------------

def init_params(key, input_dim, emb_dim, hidden_dim, num_layers=2):
    keys = iter(jax.random.split(key, 4 * num_layers + 1))
    scale = 1.0 / jnp.sqrt(hidden_dim)
    params = {
        "embedding": jax.random.normal(next(keys), (input_dim, emb_dim), jnp.float32),
        "gru": [],
    }
    for layer in range(num_layers):
        in_dim = emb_dim if layer == 0 else 2 * hidden_dim
        params["gru"].append({
            # [direction, gate(r,z,n), F, H]: pre-transposed for x @ W
            "w_ih": jax.random.uniform(next(keys), (2, 3, in_dim, hidden_dim),
                                       jnp.float32, -scale, scale),
            # [direction, gate(r,z,n), H, H]: pre-transposed for h @ W
            "w_hh": jax.random.uniform(next(keys), (2, 3, hidden_dim, hidden_dim),
                                       jnp.float32, -scale, scale),
            "b_ih": jax.random.uniform(next(keys), (2, 3, hidden_dim),
                                       jnp.float32, -scale, scale),
            "b_hh": jax.random.uniform(next(keys), (2, 3, hidden_dim),
                                       jnp.float32, -scale, scale),
        })
    return params


# -------------------------------------- main -----------------------------------------

if __name__ == "__main__":
    INPUT_DIM = 50     # vocab size
    EMB_DIM = 16
    HIDDEN_DIM = 32
    NUM_LAYERS = 2
    BATCH = 2
    SEQ_LEN = 8

    key = jax.random.PRNGKey(0)
    pkey, tkey = jax.random.split(key)
    params = init_params(pkey, INPUT_DIM, EMB_DIM, HIDDEN_DIM, NUM_LAYERS)
    token_seq = jax.random.randint(tkey, (BATCH, SEQ_LEN), 0, INPUT_DIM, dtype=jnp.int32)

    fwd = functools.partial(encoder_forward, num_layers=NUM_LAYERS, state_type="concat")
    hidden, outputs = jax.jit(fwd)(params, token_seq)
    jax.block_until_ready((hidden, outputs))

    # sanity-check against a pure-JAX lax.scan reference (same bf16-MXU numerics)
    hidden_ref, outputs_ref = encoder_forward_ref(params, token_seq, NUM_LAYERS)
    assert hidden.shape == (BATCH, 2 * HIDDEN_DIM)
    assert outputs.shape == (BATCH, SEQ_LEN, 2 * HIDDEN_DIM)
    assert jnp.allclose(hidden, hidden_ref, rtol=2e-3, atol=2e-3)
    assert jnp.allclose(outputs, outputs_ref, rtol=2e-3, atol=2e-3)

    print("KERNEL_OK")
</pallas_src>

<mosaic_0001>
module attributes {stable_mosaic.version = 11 : i64} {
  func.func @_bigru_layer_kernel(%arg0: memref<2x3x8x8x32xf32, #tpu.memory_space<vmem>>, %arg1: memref<2x32x96xbf16, #tpu.memory_space<vmem>>, %arg2: memref<2x1x32xf32, #tpu.memory_space<vmem>>, %arg3: memref<2x8x8x32xf32, #tpu.memory_space<vmem>>) attributes {dimension_semantics = [], scalar_prefetch = 0 : i64, scratch_operands = 0 : i64, tpu.core_type = #tpu.core_type<tc>} {
    %c0 = arith.constant 0 : index
    %c0_0 = arith.constant 0 : index
    %c0_1 = arith.constant 0 : index
    %0 = vector.load %arg1[%c0, %c0_0, %c0_1] : memref<2x32x96xbf16, #tpu.memory_space<vmem>>, vector<1x32x96xbf16>
    %1 = vector.shape_cast %0 : vector<1x32x96xbf16> to vector<32x96xbf16>
    %c1 = arith.constant 1 : index
    %c0_2 = arith.constant 0 : index
    %c0_3 = arith.constant 0 : index
    %2 = vector.load %arg1[%c1, %c0_2, %c0_3] : memref<2x32x96xbf16, #tpu.memory_space<vmem>>, vector<1x32x96xbf16>
    %3 = vector.shape_cast %2 : vector<1x32x96xbf16> to vector<32x96xbf16>
    %c0_4 = arith.constant 0 : index
    %c0_5 = arith.constant 0 : index
    %c0_6 = arith.constant 0 : index
    %4 = vector.load %arg2[%c0_4, %c0_5, %c0_6] : memref<2x1x32xf32, #tpu.memory_space<vmem>>, vector<1x1x32xf32>
    %5 = vector.shape_cast %4 : vector<1x1x32xf32> to vector<1x32xf32>
    %c1_7 = arith.constant 1 : index
    %c0_8 = arith.constant 0 : index
    %c0_9 = arith.constant 0 : index
    %6 = vector.load %arg2[%c1_7, %c0_8, %c0_9] : memref<2x1x32xf32, #tpu.memory_space<vmem>>, vector<1x1x32xf32>
    %7 = vector.shape_cast %6 : vector<1x1x32xf32> to vector<1x32xf32>
    %cst = arith.constant 0.000000e+00 : f32
    %8 = vector.broadcast %cst : f32 to vector<8x32xf32>
    %c0_i32 = arith.constant 0 : i32
    %c7_i32 = arith.constant 7 : i32
    %9 = arith.subi %c7_i32, %c0_i32 : i32
    %c0_10 = arith.constant 0 : index
    %c0_11 = arith.constant 0 : index
    %10 = arith.index_cast %c0_i32 : i32 to index
    %c0_12 = arith.constant 0 : index
    %c0_13 = arith.constant 0 : index
    %11 = vector.load %arg0[%c0_10, %c0_11, %10, %c0_12, %c0_13] : memref<2x3x8x8x32xf32, #tpu.memory_space<vmem>>, vector<1x1x1x8x32xf32>
    %12 = vector.shape_cast %11 : vector<1x1x1x8x32xf32> to vector<8x32xf32>
    %c0_14 = arith.constant 0 : index
    %c1_15 = arith.constant 1 : index
    %13 = arith.index_cast %c0_i32 : i32 to index
    %c0_16 = arith.constant 0 : index
    %c0_17 = arith.constant 0 : index
    %14 = vector.load %arg0[%c0_14, %c1_15, %13, %c0_16, %c0_17] : memref<2x3x8x8x32xf32, #tpu.memory_space<vmem>>, vector<1x1x1x8x32xf32>
    %15 = vector.shape_cast %14 : vector<1x1x1x8x32xf32> to vector<8x32xf32>
    %c0_18 = arith.constant 0 : index
    %c2 = arith.constant 2 : index
    %16 = arith.index_cast %c0_i32 : i32 to index
    %c0_19 = arith.constant 0 : index
    %c0_20 = arith.constant 0 : index
    %17 = vector.load %arg0[%c0_18, %c2, %16, %c0_19, %c0_20] : memref<2x3x8x8x32xf32, #tpu.memory_space<vmem>>, vector<1x1x1x8x32xf32>
    %18 = vector.shape_cast %17 : vector<1x1x1x8x32xf32> to vector<8x32xf32>
    %19 = arith.truncf %8 : vector<8x32xf32> to vector<8x32xbf16>
    %cst_21 = arith.constant dense<0.000000e+00> : vector<8x96xf32>
    %20 = tpu.matmul %19, %1, %cst_21 {dimension_numbers = #tpu.dot_dimension_numbers<[1], [0], [0], [1], [0, 0, 1, 1], [], []>} : vector<8x32xbf16>, vector<32x96xbf16>, vector<8x96xf32> -> vector<8x96xf32>
    %21 = vector.extract_strided_slice %20 {offsets = [0, 0], sizes = [8, 32], strides = [1, 1]} : vector<8x96xf32> to vector<8x32xf32>
    %22 = arith.addf %12, %21 : vector<8x32xf32>
    %23 = arith.negf %22 : vector<8x32xf32>
    %24 = math.exp %23 : vector<8x32xf32>
    %cst_22 = arith.constant 1.000000e+00 : f32
    %25 = vector.broadcast %cst_22 : f32 to vector<8x32xf32>
    %26 = arith.addf %25, %24 : vector<8x32xf32>
    %27 = arith.divf %25, %26 : vector<8x32xf32>
    %28 = vector.extract_strided_slice %20 {offsets = [0, 32], sizes = [8, 32], strides = [1, 1]} : vector<8x96xf32> to vector<8x32xf32>
    %29 = arith.addf %15, %28 : vector<8x32xf32>
    %30 = arith.negf %29 : vector<8x32xf32>
    %31 = math.exp %30 : vector<8x32xf32>
    %cst_23 = arith.constant 1.000000e+00 : f32
    %32 = vector.broadcast %cst_23 : f32 to vector<8x32xf32>
    %33 = arith.addf %32, %31 : vector<8x32xf32>
    %34 = arith.divf %32, %33 : vector<8x32xf32>
    %35 = vector.extract_strided_slice %20 {offsets = [0, 64], sizes = [8, 32], strides = [1, 1]} : vector<8x96xf32> to vector<8x32xf32>
    %36 = vector.broadcast %5 : vector<1x32xf32> to vector<8x32xf32>
    %37 = arith.addf %35, %36 : vector<8x32xf32>
    %38 = arith.mulf %27, %37 : vector<8x32xf32>
    %39 = arith.addf %18, %38 : vector<8x32xf32>
    %40 = math.tanh %39 : vector<8x32xf32>
    %cst_24 = arith.constant 1.000000e+00 : f32
    %41 = vector.broadcast %cst_24 : f32 to vector<8x32xf32>
    %42 = arith.subf %41, %34 : vector<8x32xf32>
    %43 = arith.mulf %42, %40 : vector<8x32xf32>
    %44 = arith.mulf %34, %8 : vector<8x32xf32>
    %45 = arith.addf %43, %44 : vector<8x32xf32>
    %c1_25 = arith.constant 1 : index
    %c0_26 = arith.constant 0 : index
    %46 = arith.index_cast %9 : i32 to index
    %c0_27 = arith.constant 0 : index
    %c0_28 = arith.constant 0 : index
    %47 = vector.load %arg0[%c1_25, %c0_26, %46, %c0_27, %c0_28] : memref<2x3x8x8x32xf32, #tpu.memory_space<vmem>>, vector<1x1x1x8x32xf32>
    %48 = vector.shape_cast %47 : vector<1x1x1x8x32xf32> to vector<8x32xf32>
    %c1_29 = arith.constant 1 : index
    %c1_30 = arith.constant 1 : index
    %49 = arith.index_cast %9 : i32 to index
    %c0_31 = arith.constant 0 : index
    %c0_32 = arith.constant 0 : index
    %50 = vector.load %arg0[%c1_29, %c1_30, %49, %c0_31, %c0_32] : memref<2x3x8x8x32xf32, #tpu.memory_space<vmem>>, vector<1x1x1x8x32xf32>
    %51 = vector.shape_cast %50 : vector<1x1x1x8x32xf32> to vector<8x32xf32>
    %c1_33 = arith.constant 1 : index
    %c2_34 = arith.constant 2 : index
    %52 = arith.index_cast %9 : i32 to index
    %c0_35 = arith.constant 0 : index
    %c0_36 = arith.constant 0 : index
    %53 = vector.load %arg0[%c1_33, %c2_34, %52, %c0_35, %c0_36] : memref<2x3x8x8x32xf32, #tpu.memory_space<vmem>>, vector<1x1x1x8x32xf32>
    %54 = vector.shape_cast %53 : vector<1x1x1x8x32xf32> to vector<8x32xf32>
    %55 = arith.truncf %8 : vector<8x32xf32> to vector<8x32xbf16>
    %cst_37 = arith.constant dense<0.000000e+00> : vector<8x96xf32>
    %56 = tpu.matmul %55, %3, %cst_37 {dimension_numbers = #tpu.dot_dimension_numbers<[1], [0], [0], [1], [0, 0, 1, 1], [], []>} : vector<8x32xbf16>, vector<32x96xbf16>, vector<8x96xf32> -> vector<8x96xf32>
    %57 = vector.extract_strided_slice %56 {offsets = [0, 0], sizes = [8, 32], strides = [1, 1]} : vector<8x96xf32> to vector<8x32xf32>
    %58 = arith.addf %48, %57 : vector<8x32xf32>
    %59 = arith.negf %58 : vector<8x32xf32>
    %60 = math.exp %59 : vector<8x32xf32>
    %cst_38 = arith.constant 1.000000e+00 : f32
    %61 = vector.broadcast %cst_38 : f32 to vector<8x32xf32>
    %62 = arith.addf %61, %60 : vector<8x32xf32>
    %63 = arith.divf %61, %62 : vector<8x32xf32>
    %64 = vector.extract_strided_slice %56 {offsets = [0, 32], sizes = [8, 32], strides = [1, 1]} : vector<8x96xf32> to vector<8x32xf32>
    %65 = arith.addf %51, %64 : vector<8x32xf32>
    %66 = arith.negf %65 : vector<8x32xf32>
    %67 = math.exp %66 : vector<8x32xf32>
    %cst_39 = arith.constant 1.000000e+00 : f32
    %68 = vector.broadcast %cst_39 : f32 to vector<8x32xf32>
    %69 = arith.addf %68, %67 : vector<8x32xf32>
    %70 = arith.divf %68, %69 : vector<8x32xf32>
    %71 = vector.extract_strided_slice %56 {offsets = [0, 64], sizes = [8, 32], strides = [1, 1]} : vector<8x96xf32> to vector<8x32xf32>
    %72 = vector.broadcast %7 : vector<1x32xf32> to vector<8x32xf32>
    %73 = arith.addf %71, %72 : vector<8x32xf32>
    %74 = arith.mulf %63, %73 : vector<8x32xf32>
    %75 = arith.addf %54, %74 : vector<8x32xf32>
    %76 = math.tanh %75 : vector<8x32xf32>
    %cst_40 = arith.constant 1.000000e+00 : f32
    %77 = vector.broadcast %cst_40 : f32 to vector<8x32xf32>
    %78 = arith.subf %77, %70 : vector<8x32xf32>
    %79 = arith.mulf %78, %76 : vector<8x32xf32>
    %80 = arith.mulf %70, %8 : vector<8x32xf32>
    %81 = arith.addf %79, %80 : vector<8x32xf32>
    %c0_41 = arith.constant 0 : index
    %82 = arith.index_cast %c0_i32 : i32 to index
    %c0_42 = arith.constant 0 : index
    %c0_43 = arith.constant 0 : index
    %83 = vector.load %arg3[%c0_41, %82, %c0_42, %c0_43] : memref<2x8x8x32xf32, #tpu.memory_space<vmem>>, vector<1x1x8x32xf32>
    %84 = vector.shape_cast %83 : vector<1x1x8x32xf32> to vector<8x32xf32>
    %85 = vector.shape_cast %45 : vector<8x32xf32> to vector<1x1x8x32xf32>
    tpu.vector_store %arg3[%c0_41, %82, %c0_42, %c0_43], %85 {strides = array<i32>} : memref<2x8x8x32xf32, #tpu.memory_space<vmem>>, vector<1x1x8x32xf32>,
    %c1_44 = arith.constant 1 : index
    %86 = arith.index_cast %9 : i32 to index
    %c0_45 = arith.constant 0 : index
    %c0_46 = arith.constant 0 : index
    %87 = vector.load %arg3[%c1_44, %86, %c0_45, %c0_46] : memref<2x8x8x32xf32, #tpu.memory_space<vmem>>, vector<1x1x8x32xf32>
    %88 = vector.shape_cast %87 : vector<1x1x8x32xf32> to vector<8x32xf32>
    %89 = vector.shape_cast %81 : vector<8x32xf32> to vector<1x1x8x32xf32>
    tpu.vector_store %arg3[%c1_44, %86, %c0_45, %c0_46], %89 {strides = array<i32>} : memref<2x8x8x32xf32, #tpu.memory_space<vmem>>, vector<1x1x8x32xf32>,
    %c1_i32 = arith.constant 1 : i32
    %c7_i32_47 = arith.constant 7 : i32
    %90 = arith.subi %c7_i32_47, %c1_i32 : i32
    %c0_48 = arith.constant 0 : index
    %c0_49 = arith.constant 0 : index
    %91 = arith.index_cast %c1_i32 : i32 to index
    %c0_50 = arith.constant 0 : index
    %c0_51 = arith.constant 0 : index
    %92 = vector.load %arg0[%c0_48, %c0_49, %91, %c0_50, %c0_51] : memref<2x3x8x8x32xf32, #tpu.memory_space<vmem>>, vector<1x1x1x8x32xf32>
    %93 = vector.shape_cast %92 : vector<1x1x1x8x32xf32> to vector<8x32xf32>
    %c0_52 = arith.constant 0 : index
    %c1_53 = arith.constant 1 : index
    %94 = arith.index_cast %c1_i32 : i32 to index
    %c0_54 = arith.constant 0 : index
    %c0_55 = arith.constant 0 : index
    %95 = vector.load %arg0[%c0_52, %c1_53, %94, %c0_54, %c0_55] : memref<2x3x8x8x32xf32, #tpu.memory_space<vmem>>, vector<1x1x1x8x32xf32>
    %96 = vector.shape_cast %95 : vector<1x1x1x8x32xf32> to vector<8x32xf32>
    %c0_56 = arith.constant 0 : index
    %c2_57 = arith.constant 2 : index
    %97 = arith.index_cast %c1_i32 : i32 to index
    %c0_58 = arith.constant 0 : index
    %c0_59 = arith.constant 0 : index
    %98 = vector.load %arg0[%c0_56, %c2_57, %97, %c0_58, %c0_59] : memref<2x3x8x8x32xf32, #tpu.memory_space<vmem>>, vector<1x1x1x8x32xf32>
    %99 = vector.shape_cast %98 : vector<1x1x1x8x32xf32> to vector<8x32xf32>
    %100 = arith.truncf %45 : vector<8x32xf32> to vector<8x32xbf16>
    %cst_60 = arith.constant dense<0.000000e+00> : vector<8x96xf32>
    %101 = tpu.matmul %100, %1, %cst_60 {dimension_numbers = #tpu.dot_dimension_numbers<[1], [0], [0], [1], [0, 0, 1, 1], [], []>} : vector<8x32xbf16>, vector<32x96xbf16>, vector<8x96xf32> -> vector<8x96xf32>
    %102 = vector.extract_strided_slice %101 {offsets = [0, 0], sizes = [8, 32], strides = [1, 1]} : vector<8x96xf32> to vector<8x32xf32>
    %103 = arith.addf %93, %102 : vector<8x32xf32>
    %104 = arith.negf %103 : vector<8x32xf32>
    %105 = math.exp %104 : vector<8x32xf32>
    %cst_61 = arith.constant 1.000000e+00 : f32
    %106 = vector.broadcast %cst_61 : f32 to vector<8x32xf32>
    %107 = arith.addf %106, %105 : vector<8x32xf32>
    %108 = arith.divf %106, %107 : vector<8x32xf32>
    %109 = vector.extract_strided_slice %101 {offsets = [0, 32], sizes = [8, 32], strides = [1, 1]} : vector<8x96xf32> to vector<8x32xf32>
    %110 = arith.addf %96, %109 : vector<8x32xf32>
    %111 = arith.negf %110 : vector<8x32xf32>
    %112 = math.exp %111 : vector<8x32xf32>
    %cst_62 = arith.constant 1.000000e+00 : f32
    %113 = vector.broadcast %cst_62 : f32 to vector<8x32xf32>
    %114 = arith.addf %113, %112 : vector<8x32xf32>
    %115 = arith.divf %113, %114 : vector<8x32xf32>
    %116 = vector.extract_strided_slice %101 {offsets = [0, 64], sizes = [8, 32], strides = [1, 1]} : vector<8x96xf32> to vector<8x32xf32>
    %117 = vector.broadcast %5 : vector<1x32xf32> to vector<8x32xf32>
    %118 = arith.addf %116, %117 : vector<8x32xf32>
    %119 = arith.mulf %108, %118 : vector<8x32xf32>
    %120 = arith.addf %99, %119 : vector<8x32xf32>
    %121 = math.tanh %120 : vector<8x32xf32>
    %cst_63 = arith.constant 1.000000e+00 : f32
    %122 = vector.broadcast %cst_63 : f32 to vector<8x32xf32>
    %123 = arith.subf %122, %115 : vector<8x32xf32>
    %124 = arith.mulf %123, %121 : vector<8x32xf32>
    %125 = arith.mulf %115, %45 : vector<8x32xf32>
    %126 = arith.addf %124, %125 : vector<8x32xf32>
    %c1_64 = arith.constant 1 : index
    %c0_65 = arith.constant 0 : index
    %127 = arith.index_cast %90 : i32 to index
    %c0_66 = arith.constant 0 : index
    %c0_67 = arith.constant 0 : index
    %128 = vector.load %arg0[%c1_64, %c0_65, %127, %c0_66, %c0_67] : memref<2x3x8x8x32xf32, #tpu.memory_space<vmem>>, vector<1x1x1x8x32xf32>
    %129 = vector.shape_cast %128 : vector<1x1x1x8x32xf32> to vector<8x32xf32>
    %c1_68 = arith.constant 1 : index
    %c1_69 = arith.constant 1 : index
    %130 = arith.index_cast %90 : i32 to index
    %c0_70 = arith.constant 0 : index
    %c0_71 = arith.constant 0 : index
    %131 = vector.load %arg0[%c1_68, %c1_69, %130, %c0_70, %c0_71] : memref<2x3x8x8x32xf32, #tpu.memory_space<vmem>>, vector<1x1x1x8x32xf32>
    %132 = vector.shape_cast %131 : vector<1x1x1x8x32xf32> to vector<8x32xf32>
    %c1_72 = arith.constant 1 : index
    %c2_73 = arith.constant 2 : index
    %133 = arith.index_cast %90 : i32 to index
    %c0_74 = arith.constant 0 : index
    %c0_75 = arith.constant 0 : index
    %134 = vector.load %arg0[%c1_72, %c2_73, %133, %c0_74, %c0_75] : memref<2x3x8x8x32xf32, #tpu.memory_space<vmem>>, vector<1x1x1x8x32xf32>
    %135 = vector.shape_cast %134 : vector<1x1x1x8x32xf32> to vector<8x32xf32>
    %136 = arith.truncf %81 : vector<8x32xf32> to vector<8x32xbf16>
    %cst_76 = arith.constant dense<0.000000e+00> : vector<8x96xf32>
    %137 = tpu.matmul %136, %3, %cst_76 {dimension_numbers = #tpu.dot_dimension_numbers<[1], [0], [0], [1], [0, 0, 1, 1], [], []>} : vector<8x32xbf16>, vector<32x96xbf16>, vector<8x96xf32> -> vector<8x96xf32>
    %138 = vector.extract_strided_slice %137 {offsets = [0, 0], sizes = [8, 32], strides = [1, 1]} : vector<8x96xf32> to vector<8x32xf32>
    %139 = arith.addf %129, %138 : vector<8x32xf32>
    %140 = arith.negf %139 : vector<8x32xf32>
    %141 = math.exp %140 : vector<8x32xf32>
    %cst_77 = arith.constant 1.000000e+00 : f32
    %142 = vector.broadcast %cst_77 : f32 to vector<8x32xf32>
    %143 = arith.addf %142, %141 : vector<8x32xf32>
    %144 = arith.divf %142, %143 : vector<8x32xf32>
    %145 = vector.extract_strided_slice %137 {offsets = [0, 32], sizes = [8, 32], strides = [1, 1]} : vector<8x96xf32> to vector<8x32xf32>
    %146 = arith.addf %132, %145 : vector<8x32xf32>
    %147 = arith.negf %146 : vector<8x32xf32>
    %148 = math.exp %147 : vector<8x32xf32>
    %cst_78 = arith.constant 1.000000e+00 : f32
    %149 = vector.broadcast %cst_78 : f32 to vector<8x32xf32>
    %150 = arith.addf %149, %148 : vector<8x32xf32>
    %151 = arith.divf %149, %150 : vector<8x32xf32>
    %152 = vector.extract_strided_slice %137 {offsets = [0, 64], sizes = [8, 32], strides = [1, 1]} : vector<8x96xf32> to vector<8x32xf32>
    %153 = vector.broadcast %7 : vector<1x32xf32> to vector<8x32xf32>
    %154 = arith.addf %152, %153 : vector<8x32xf32>
    %155 = arith.mulf %144, %154 : vector<8x32xf32>
    %156 = arith.addf %135, %155 : vector<8x32xf32>
    %157 = math.tanh %156 : vector<8x32xf32>
    %cst_79 = arith.constant 1.000000e+00 : f32
    %158 = vector.broadcast %cst_79 : f32 to vector<8x32xf32>
    %159 = arith.subf %158, %151 : vector<8x32xf32>
    %160 = arith.mulf %159, %157 : vector<8x32xf32>
    %161 = arith.mulf %151, %81 : vector<8x32xf32>
    %162 = arith.addf %160, %161 : vector<8x32xf32>
    %c0_80 = arith.constant 0 : index
    %163 = arith.index_cast %c1_i32 : i32 to index
    %c0_81 = arith.constant 0 : index
    %c0_82 = arith.constant 0 : index
    %164 = vector.load %arg3[%c0_80, %163, %c0_81, %c0_82] : memref<2x8x8x32xf32, #tpu.memory_space<vmem>>, vector<1x1x8x32xf32>
    %165 = vector.shape_cast %164 : vector<1x1x8x32xf32> to vector<8x32xf32>
    %166 = vector.shape_cast %126 : vector<8x32xf32> to vector<1x1x8x32xf32>
    tpu.vector_store %arg3[%c0_80, %163, %c0_81, %c0_82], %166 {strides = array<i32>} : memref<2x8x8x32xf32, #tpu.memory_space<vmem>>, vector<1x1x8x32xf32>,
    %c1_83 = arith.constant 1 : index
    %167 = arith.index_cast %90 : i32 to index
    %c0_84 = arith.constant 0 : index
    %c0_85 = arith.constant 0 : index
    %168 = vector.load %arg3[%c1_83, %167, %c0_84, %c0_85] : memref<2x8x8x32xf32, #tpu.memory_space<vmem>>, vector<1x1x8x32xf32>
    %169 = vector.shape_cast %168 : vector<1x1x8x32xf32> to vector<8x32xf32>
    %170 = vector.shape_cast %162 : vector<8x32xf32> to vector<1x1x8x32xf32>
    tpu.vector_store %arg3[%c1_83, %167, %c0_84, %c0_85], %170 {strides = array<i32>} : memref<2x8x8x32xf32, #tpu.memory_space<vmem>>, vector<1x1x8x32xf32>,
    %c2_i32 = arith.constant 2 : i32
    %c7_i32_86 = arith.constant 7 : i32
    %171 = arith.subi %c7_i32_86, %c2_i32 : i32
    %c0_87 = arith.constant 0 : index
    %c0_88 = arith.constant 0 : index
    %172 = arith.index_cast %c2_i32 : i32 to index
    %c0_89 = arith.constant 0 : index
    %c0_90 = arith.constant 0 : index
    %173 = vector.load %arg0[%c0_87, %c0_88, %172, %c0_89, %c0_90] : memref<2x3x8x8x32xf32, #tpu.memory_space<vmem>>, vector<1x1x1x8x32xf32>
    %174 = vector.shape_cast %173 : vector<1x1x1x8x32xf32> to vector<8x32xf32>
    %c0_91 = arith.constant 0 : index
    %c1_92 = arith.constant 1 : index
    %175 = arith.index_cast %c2_i32 : i32 to index
    %c0_93 = arith.constant 0 : index
    %c0_94 = arith.constant 0 : index
    %176 = vector.load %arg0[%c0_91, %c1_92, %175, %c0_93, %c0_94] : memref<2x3x8x8x32xf32, #tpu.memory_space<vmem>>, vector<1x1x1x8x32xf32>
    %177 = vector.shape_cast %176 : vector<1x1x1x8x32xf32> to vector<8x32xf32>
    %c0_95 = arith.constant 0 : index
    %c2_96 = arith.constant 2 : index
    %178 = arith.index_cast %c2_i32 : i32 to index
    %c0_97 = arith.constant 0 : index
    %c0_98 = arith.constant 0 : index
    %179 = vector.load %arg0[%c0_95, %c2_96, %178, %c0_97, %c0_98] : memref<2x3x8x8x32xf32, #tpu.memory_space<vmem>>, vector<1x1x1x8x32xf32>
    %180 = vector.shape_cast %179 : vector<1x1x1x8x32xf32> to vector<8x32xf32>
    %181 = arith.truncf %126 : vector<8x32xf32> to vector<8x32xbf16>
    %cst_99 = arith.constant dense<0.000000e+00> : vector<8x96xf32>
    %182 = tpu.matmul %181, %1, %cst_99 {dimension_numbers = #tpu.dot_dimension_numbers<[1], [0], [0], [1], [0, 0, 1, 1], [], []>} : vector<8x32xbf16>, vector<32x96xbf16>, vector<8x96xf32> -> vector<8x96xf32>
    %183 = vector.extract_strided_slice %182 {offsets = [0, 0], sizes = [8, 32], strides = [1, 1]} : vector<8x96xf32> to vector<8x32xf32>
    %184 = arith.addf %174, %183 : vector<8x32xf32>
    %185 = arith.negf %184 : vector<8x32xf32>
    %186 = math.exp %185 : vector<8x32xf32>
    %cst_100 = arith.constant 1.000000e+00 : f32
    %187 = vector.broadcast %cst_100 : f32 to vector<8x32xf32>
    %188 = arith.addf %187, %186 : vector<8x32xf32>
    %189 = arith.divf %187, %188 : vector<8x32xf32>
    %190 = vector.extract_strided_slice %182 {offsets = [0, 32], sizes = [8, 32], strides = [1, 1]} : vector<8x96xf32> to vector<8x32xf32>
    %191 = arith.addf %177, %190 : vector<8x32xf32>
    %192 = arith.negf %191 : vector<8x32xf32>
    %193 = math.exp %192 : vector<8x32xf32>
    %cst_101 = arith.constant 1.000000e+00 : f32
    %194 = vector.broadcast %cst_101 : f32 to vector<8x32xf32>
    %195 = arith.addf %194, %193 : vector<8x32xf32>
    %196 = arith.divf %194, %195 : vector<8x32xf32>
    %197 = vector.extract_strided_slice %182 {offsets = [0, 64], sizes = [8, 32], strides = [1, 1]} : vector<8x96xf32> to vector<8x32xf32>
    %198 = vector.broadcast %5 : vector<1x32xf32> to vector<8x32xf32>
    %199 = arith.addf %197, %198 : vector<8x32xf32>
    %200 = arith.mulf %189, %199 : vector<8x32xf32>
    %201 = arith.addf %180, %200 : vector<8x32xf32>
    %202 = math.tanh %201 : vector<8x32xf32>
    %cst_102 = arith.constant 1.000000e+00 : f32
    %203 = vector.broadcast %cst_102 : f32 to vector<8x32xf32>
    %204 = arith.subf %203, %196 : vector<8x32xf32>
    %205 = arith.mulf %204, %202 : vector<8x32xf32>
    %206 = arith.mulf %196, %126 : vector<8x32xf32>
    %207 = arith.addf %205, %206 : vector<8x32xf32>
    %c1_103 = arith.constant 1 : index
    %c0_104 = arith.constant 0 : index
    %208 = arith.index_cast %171 : i32 to index
    %c0_105 = arith.constant 0 : index
    %c0_106 = arith.constant 0 : index
    %209 = vector.load %arg0[%c1_103, %c0_104, %208, %c0_105, %c0_106] : memref<2x3x8x8x32xf32, #tpu.memory_space<vmem>>, vector<1x1x1x8x32xf32>
    %210 = vector.shape_cast %209 : vector<1x1x1x8x32xf32> to vector<8x32xf32>
    %c1_107 = arith.constant 1 : index
    %c1_108 = arith.constant 1 : index
    %211 = arith.index_cast %171 : i32 to index
    %c0_109 = arith.constant 0 : index
    %c0_110 = arith.constant 0 : index
    %212 = vector.load %arg0[%c1_107, %c1_108, %211, %c0_109, %c0_110] : memref<2x3x8x8x32xf32, #tpu.memory_space<vmem>>, vector<1x1x1x8x32xf32>
    %213 = vector.shape_cast %212 : vector<1x1x1x8x32xf32> to vector<8x32xf32>
    %c1_111 = arith.constant 1 : index
    %c2_112 = arith.constant 2 : index
    %214 = arith.index_cast %171 : i32 to index
    %c0_113 = arith.constant 0 : index
    %c0_114 = arith.constant 0 : index
    %215 = vector.load %arg0[%c1_111, %c2_112, %214, %c0_113, %c0_114] : memref<2x3x8x8x32xf32, #tpu.memory_space<vmem>>, vector<1x1x1x8x32xf32>
    %216 = vector.shape_cast %215 : vector<1x1x1x8x32xf32> to vector<8x32xf32>
    %217 = arith.truncf %162 : vector<8x32xf32> to vector<8x32xbf16>
    %cst_115 = arith.constant dense<0.000000e+00> : vector<8x96xf32>
    %218 = tpu.matmul %217, %3, %cst_115 {dimension_numbers = #tpu.dot_dimension_numbers<[1], [0], [0], [1], [0, 0, 1, 1], [], []>} : vector<8x32xbf16>, vector<32x96xbf16>, vector<8x96xf32> -> vector<8x96xf32>
    %219 = vector.extract_strided_slice %218 {offsets = [0, 0], sizes = [8, 32], strides = [1, 1]} : vector<8x96xf32> to vector<8x32xf32>
    %220 = arith.addf %210, %219 : vector<8x32xf32>
    %221 = arith.negf %220 : vector<8x32xf32>
    %222 = math.exp %221 : vector<8x32xf32>
    %cst_116 = arith.constant 1.000000e+00 : f32
    %223 = vector.broadcast %cst_116 : f32 to vector<8x32xf32>
    %224 = arith.addf %223, %222 : vector<8x32xf32>
    %225 = arith.divf %223, %224 : vector<8x32xf32>
    %226 = vector.extract_strided_slice %218 {offsets = [0, 32], sizes = [8, 32], strides = [1, 1]} : vector<8x96xf32> to vector<8x32xf32>
    %227 = arith.addf %213, %226 : vector<8x32xf32>
    %228 = arith.negf %227 : vector<8x32xf32>
    %229 = math.exp %228 : vector<8x32xf32>
    %cst_117 = arith.constant 1.000000e+00 : f32
    %230 = vector.broadcast %cst_117 : f32 to vector<8x32xf32>
    %231 = arith.addf %230, %229 : vector<8x32xf32>
    %232 = arith.divf %230, %231 : vector<8x32xf32>
    %233 = vector.extract_strided_slice %218 {offsets = [0, 64], sizes = [8, 32], strides = [1, 1]} : vector<8x96xf32> to vector<8x32xf32>
    %234 = vector.broadcast %7 : vector<1x32xf32> to vector<8x32xf32>
    %235 = arith.addf %233, %234 : vector<8x32xf32>
    %236 = arith.mulf %225, %235 : vector<8x32xf32>
    %237 = arith.addf %216, %236 : vector<8x32xf32>
    %238 = math.tanh %237 : vector<8x32xf32>
    %cst_118 = arith.constant 1.000000e+00 : f32
    %239 = vector.broadcast %cst_118 : f32 to vector<8x32xf32>
    %240 = arith.subf %239, %232 : vector<8x32xf32>
    %241 = arith.mulf %240, %238 : vector<8x32xf32>
    %242 = arith.mulf %232, %162 : vector<8x32xf32>
    %243 = arith.addf %241, %242 : vector<8x32xf32>
    %c0_119 = arith.constant 0 : index
    %244 = arith.index_cast %c2_i32 : i32 to index
    %c0_120 = arith.constant 0 : index
    %c0_121 = arith.constant 0 : index
    %245 = vector.load %arg3[%c0_119, %244, %c0_120, %c0_121] : memref<2x8x8x32xf32, #tpu.memory_space<vmem>>, vector<1x1x8x32xf32>
    %246 = vector.shape_cast %245 : vector<1x1x8x32xf32> to vector<8x32xf32>
    %247 = vector.shape_cast %207 : vector<8x32xf32> to vector<1x1x8x32xf32>
    tpu.vector_store %arg3[%c0_119, %244, %c0_120, %c0_121], %247 {strides = array<i32>} : memref<2x8x8x32xf32, #tpu.memory_space<vmem>>, vector<1x1x8x32xf32>,
    %c1_122 = arith.constant 1 : index
    %248 = arith.index_cast %171 : i32 to index
    %c0_123 = arith.constant 0 : index
    %c0_124 = arith.constant 0 : index
    %249 = vector.load %arg3[%c1_122, %248, %c0_123, %c0_124] : memref<2x8x8x32xf32, #tpu.memory_space<vmem>>, vector<1x1x8x32xf32>
    %250 = vector.shape_cast %249 : vector<1x1x8x32xf32> to vector<8x32xf32>
    %251 = vector.shape_cast %243 : vector<8x32xf32> to vector<1x1x8x32xf32>
    tpu.vector_store %arg3[%c1_122, %248, %c0_123, %c0_124], %251 {strides = array<i32>} : memref<2x8x8x32xf32, #tpu.memory_space<vmem>>, vector<1x1x8x32xf32>,
    %c3_i32 = arith.constant 3 : i32
    %c7_i32_125 = arith.constant 7 : i32
    %252 = arith.subi %c7_i32_125, %c3_i32 : i32
    %c0_126 = arith.constant 0 : index
    %c0_127 = arith.constant 0 : index
    %253 = arith.index_cast %c3_i32 : i32 to index
    %c0_128 = arith.constant 0 : index
    %c0_129 = arith.constant 0 : index
    %254 = vector.load %arg0[%c0_126, %c0_127, %253, %c0_128, %c0_129] : memref<2x3x8x8x32xf32, #tpu.memory_space<vmem>>, vector<1x1x1x8x32xf32>
    %255 = vector.shape_cast %254 : vector<1x1x1x8x32xf32> to vector<8x32xf32>
    %c0_130 = arith.constant 0 : index
    %c1_131 = arith.constant 1 : index
    %256 = arith.index_cast %c3_i32 : i32 to index
    %c0_132 = arith.constant 0 : index
    %c0_133 = arith.constant 0 : index
    %257 = vector.load %arg0[%c0_130, %c1_131, %256, %c0_132, %c0_133] : memref<2x3x8x8x32xf32, #tpu.memory_space<vmem>>, vector<1x1x1x8x32xf32>
    %258 = vector.shape_cast %257 : vector<1x1x1x8x32xf32> to vector<8x32xf32>
    %c0_134 = arith.constant 0 : index
    %c2_135 = arith.constant 2 : index
    %259 = arith.index_cast %c3_i32 : i32 to index
    %c0_136 = arith.constant 0 : index
    %c0_137 = arith.constant 0 : index
    %260 = vector.load %arg0[%c0_134, %c2_135, %259, %c0_136, %c0_137] : memref<2x3x8x8x32xf32, #tpu.memory_space<vmem>>, vector<1x1x1x8x32xf32>
    %261 = vector.shape_cast %260 : vector<1x1x1x8x32xf32> to vector<8x32xf32>
    %262 = arith.truncf %207 : vector<8x32xf32> to vector<8x32xbf16>
    %cst_138 = arith.constant dense<0.000000e+00> : vector<8x96xf32>
    %263 = tpu.matmul %262, %1, %cst_138 {dimension_numbers = #tpu.dot_dimension_numbers<[1], [0], [0], [1], [0, 0, 1, 1], [], []>} : vector<8x32xbf16>, vector<32x96xbf16>, vector<8x96xf32> -> vector<8x96xf32>
    %264 = vector.extract_strided_slice %263 {offsets = [0, 0], sizes = [8, 32], strides = [1, 1]} : vector<8x96xf32> to vector<8x32xf32>
    %265 = arith.addf %255, %264 : vector<8x32xf32>
    %266 = arith.negf %265 : vector<8x32xf32>
    %267 = math.exp %266 : vector<8x32xf32>
    %cst_139 = arith.constant 1.000000e+00 : f32
    %268 = vector.broadcast %cst_139 : f32 to vector<8x32xf32>
    %269 = arith.addf %268, %267 : vector<8x32xf32>
    %270 = arith.divf %268, %269 : vector<8x32xf32>
    %271 = vector.extract_strided_slice %263 {offsets = [0, 32], sizes = [8, 32], strides = [1, 1]} : vector<8x96xf32> to vector<8x32xf32>
    %272 = arith.addf %258, %271 : vector<8x32xf32>
    %273 = arith.negf %272 : vector<8x32xf32>
    %274 = math.exp %273 : vector<8x32xf32>
    %cst_140 = arith.constant 1.000000e+00 : f32
    %275 = vector.broadcast %cst_140 : f32 to vector<8x32xf32>
    %276 = arith.addf %275, %274 : vector<8x32xf32>
    %277 = arith.divf %275, %276 : vector<8x32xf32>
    %278 = vector.extract_strided_slice %263 {offsets = [0, 64], sizes = [8, 32], strides = [1, 1]} : vector<8x96xf32> to vector<8x32xf32>
    %279 = vector.broadcast %5 : vector<1x32xf32> to vector<8x32xf32>
    %280 = arith.addf %278, %279 : vector<8x32xf32>
    %281 = arith.mulf %270, %280 : vector<8x32xf32>
    %282 = arith.addf %261, %281 : vector<8x32xf32>
    %283 = math.tanh %282 : vector<8x32xf32>
    %cst_141 = arith.constant 1.000000e+00 : f32
    %284 = vector.broadcast %cst_141 : f32 to vector<8x32xf32>
    %285 = arith.subf %284, %277 : vector<8x32xf32>
    %286 = arith.mulf %285, %283 : vector<8x32xf32>
    %287 = arith.mulf %277, %207 : vector<8x32xf32>
    %288 = arith.addf %286, %287 : vector<8x32xf32>
    %c1_142 = arith.constant 1 : index
    %c0_143 = arith.constant 0 : index
    %289 = arith.index_cast %252 : i32 to index
    %c0_144 = arith.constant 0 : index
    %c0_145 = arith.constant 0 : index
    %290 = vector.load %arg0[%c1_142, %c0_143, %289, %c0_144, %c0_145] : memref<2x3x8x8x32xf32, #tpu.memory_space<vmem>>, vector<1x1x1x8x32xf32>
    %291 = vector.shape_cast %290 : vector<1x1x1x8x32xf32> to vector<8x32xf32>
    %c1_146 = arith.constant 1 : index
    %c1_147 = arith.constant 1 : index
    %292 = arith.index_cast %252 : i32 to index
    %c0_148 = arith.constant 0 : index
    %c0_149 = arith.constant 0 : index
    %293 = vector.load %arg0[%c1_146, %c1_147, %292, %c0_148, %c0_149] : memref<2x3x8x8x32xf32, #tpu.memory_space<vmem>>, vector<1x1x1x8x32xf32>
    %294 = vector.shape_cast %293 : vector<1x1x1x8x32xf32> to vector<8x32xf32>
    %c1_150 = arith.constant 1 : index
    %c2_151 = arith.constant 2 : index
    %295 = arith.index_cast %252 : i32 to index
    %c0_152 = arith.constant 0 : index
    %c0_153 = arith.constant 0 : index
    %296 = vector.load %arg0[%c1_150, %c2_151, %295, %c0_152, %c0_153] : memref<2x3x8x8x32xf32, #tpu.memory_space<vmem>>, vector<1x1x1x8x32xf32>
    %297 = vector.shape_cast %296 : vector<1x1x1x8x32xf32> to vector<8x32xf32>
    %298 = arith.truncf %243 : vector<8x32xf32> to vector<8x32xbf16>
    %cst_154 = arith.constant dense<0.000000e+00> : vector<8x96xf32>
    %299 = tpu.matmul %298, %3, %cst_154 {dimension_numbers = #tpu.dot_dimension_numbers<[1], [0], [0], [1], [0, 0, 1, 1], [], []>} : vector<8x32xbf16>, vector<32x96xbf16>, vector<8x96xf32> -> vector<8x96xf32>
    %300 = vector.extract_strided_slice %299 {offsets = [0, 0], sizes = [8, 32], strides = [1, 1]} : vector<8x96xf32> to vector<8x32xf32>
    %301 = arith.addf %291, %300 : vector<8x32xf32>
    %302 = arith.negf %301 : vector<8x32xf32>
    %303 = math.exp %302 : vector<8x32xf32>
    %cst_155 = arith.constant 1.000000e+00 : f32
    %304 = vector.broadcast %cst_155 : f32 to vector<8x32xf32>
    %305 = arith.addf %304, %303 : vector<8x32xf32>
    %306 = arith.divf %304, %305 : vector<8x32xf32>
    %307 = vector.extract_strided_slice %299 {offsets = [0, 32], sizes = [8, 32], strides = [1, 1]} : vector<8x96xf32> to vector<8x32xf32>
    %308 = arith.addf %294, %307 : vector<8x32xf32>
    %309 = arith.negf %308 : vector<8x32xf32>
    %310 = math.exp %309 : vector<8x32xf32>
    %cst_156 = arith.constant 1.000000e+00 : f32
    %311 = vector.broadcast %cst_156 : f32 to vector<8x32xf32>
    %312 = arith.addf %311, %310 : vector<8x32xf32>
    %313 = arith.divf %311, %312 : vector<8x32xf32>
    %314 = vector.extract_strided_slice %299 {offsets = [0, 64], sizes = [8, 32], strides = [1, 1]} : vector<8x96xf32> to vector<8x32xf32>
    %315 = vector.broadcast %7 : vector<1x32xf32> to vector<8x32xf32>
    %316 = arith.addf %314, %315 : vector<8x32xf32>
    %317 = arith.mulf %306, %316 : vector<8x32xf32>
    %318 = arith.addf %297, %317 : vector<8x32xf32>
    %319 = math.tanh %318 : vector<8x32xf32>
    %cst_157 = arith.constant 1.000000e+00 : f32
    %320 = vector.broadcast %cst_157 : f32 to vector<8x32xf32>
    %321 = arith.subf %320, %313 : vector<8x32xf32>
    %322 = arith.mulf %321, %319 : vector<8x32xf32>
    %323 = arith.mulf %313, %243 : vector<8x32xf32>
    %324 = arith.addf %322, %323 : vector<8x32xf32>
    %c0_158 = arith.constant 0 : index
    %325 = arith.index_cast %c3_i32 : i32 to index
    %c0_159 = arith.constant 0 : index
    %c0_160 = arith.constant 0 : index
    %326 = vector.load %arg3[%c0_158, %325, %c0_159, %c0_160] : memref<2x8x8x32xf32, #tpu.memory_space<vmem>>, vector<1x1x8x32xf32>
    %327 = vector.shape_cast %326 : vector<1x1x8x32xf32> to vector<8x32xf32>
    %328 = vector.shape_cast %288 : vector<8x32xf32> to vector<1x1x8x32xf32>
    tpu.vector_store %arg3[%c0_158, %325, %c0_159, %c0_160], %328 {strides = array<i32>} : memref<2x8x8x32xf32, #tpu.memory_space<vmem>>, vector<1x1x8x32xf32>,
    %c1_161 = arith.constant 1 : index
    %329 = arith.index_cast %252 : i32 to index
    %c0_162 = arith.constant 0 : index
    %c0_163 = arith.constant 0 : index
    %330 = vector.load %arg3[%c1_161, %329, %c0_162, %c0_163] : memref<2x8x8x32xf32, #tpu.memory_space<vmem>>, vector<1x1x8x32xf32>
    %331 = vector.shape_cast %330 : vector<1x1x8x32xf32> to vector<8x32xf32>
    %332 = vector.shape_cast %324 : vector<8x32xf32> to vector<1x1x8x32xf32>
    tpu.vector_store %arg3[%c1_161, %329, %c0_162, %c0_163], %332 {strides = array<i32>} : memref<2x8x8x32xf32, #tpu.memory_space<vmem>>, vector<1x1x8x32xf32>,
    %c4_i32 = arith.constant 4 : i32
    %c7_i32_164 = arith.constant 7 : i32
    %333 = arith.subi %c7_i32_164, %c4_i32 : i32
    %c0_165 = arith.constant 0 : index
    %c0_166 = arith.constant 0 : index
    %334 = arith.index_cast %c4_i32 : i32 to index
    %c0_167 = arith.constant 0 : index
    %c0_168 = arith.constant 0 : index
    %335 = vector.load %arg0[%c0_165, %c0_166, %334, %c0_167, %c0_168] : memref<2x3x8x8x32xf32, #tpu.memory_space<vmem>>, vector<1x1x1x8x32xf32>
    %336 = vector.shape_cast %335 : vector<1x1x1x8x32xf32> to vector<8x32xf32>
    %c0_169 = arith.constant 0 : index
    %c1_170 = arith.constant 1 : index
    %337 = arith.index_cast %c4_i32 : i32 to index
    %c0_171 = arith.constant 0 : index
    %c0_172 = arith.constant 0 : index
    %338 = vector.load %arg0[%c0_169, %c1_170, %337, %c0_171, %c0_172] : memref<2x3x8x8x32xf32, #tpu.memory_space<vmem>>, vector<1x1x1x8x32xf32>
    %339 = vector.shape_cast %338 : vector<1x1x1x8x32xf32> to vector<8x32xf32>
    %c0_173 = arith.constant 0 : index
    %c2_174 = arith.constant 2 : index
    %340 = arith.index_cast %c4_i32 : i32 to index
    %c0_175 = arith.constant 0 : index
    %c0_176 = arith.constant 0 : index
    %341 = vector.load %arg0[%c0_173, %c2_174, %340, %c0_175, %c0_176] : memref<2x3x8x8x32xf32, #tpu.memory_space<vmem>>, vector<1x1x1x8x32xf32>
    %342 = vector.shape_cast %341 : vector<1x1x1x8x32xf32> to vector<8x32xf32>
    %343 = arith.truncf %288 : vector<8x32xf32> to vector<8x32xbf16>
    %cst_177 = arith.constant dense<0.000000e+00> : vector<8x96xf32>
    %344 = tpu.matmul %343, %1, %cst_177 {dimension_numbers = #tpu.dot_dimension_numbers<[1], [0], [0], [1], [0, 0, 1, 1], [], []>} : vector<8x32xbf16>, vector<32x96xbf16>, vector<8x96xf32> -> vector<8x96xf32>
    %345 = vector.extract_strided_slice %344 {offsets = [0, 0], sizes = [8, 32], strides = [1, 1]} : vector<8x96xf32> to vector<8x32xf32>
    %346 = arith.addf %336, %345 : vector<8x32xf32>
    %347 = arith.negf %346 : vector<8x32xf32>
    %348 = math.exp %347 : vector<8x32xf32>
    %cst_178 = arith.constant 1.000000e+00 : f32
    %349 = vector.broadcast %cst_178 : f32 to vector<8x32xf32>
    %350 = arith.addf %349, %348 : vector<8x32xf32>
    %351 = arith.divf %349, %350 : vector<8x32xf32>
    %352 = vector.extract_strided_slice %344 {offsets = [0, 32], sizes = [8, 32], strides = [1, 1]} : vector<8x96xf32> to vector<8x32xf32>
    %353 = arith.addf %339, %352 : vector<8x32xf32>
    %354 = arith.negf %353 : vector<8x32xf32>
    %355 = math.exp %354 : vector<8x32xf32>
    %cst_179 = arith.constant 1.000000e+00 : f32
    %356 = vector.broadcast %cst_179 : f32 to vector<8x32xf32>
    %357 = arith.addf %356, %355 : vector<8x32xf32>
    %358 = arith.divf %356, %357 : vector<8x32xf32>
    %359 = vector.extract_strided_slice %344 {offsets = [0, 64], sizes = [8, 32], strides = [1, 1]} : vector<8x96xf32> to vector<8x32xf32>
    %360 = vector.broadcast %5 : vector<1x32xf32> to vector<8x32xf32>
    %361 = arith.addf %359, %360 : vector<8x32xf32>
    %362 = arith.mulf %351, %361 : vector<8x32xf32>
    %363 = arith.addf %342, %362 : vector<8x32xf32>
    %364 = math.tanh %363 : vector<8x32xf32>
    %cst_180 = arith.constant 1.000000e+00 : f32
    %365 = vector.broadcast %cst_180 : f32 to vector<8x32xf32>
    %366 = arith.subf %365, %358 : vector<8x32xf32>
    %367 = arith.mulf %366, %364 : vector<8x32xf32>
    %368 = arith.mulf %358, %288 : vector<8x32xf32>
    %369 = arith.addf %367, %368 : vector<8x32xf32>
    %c1_181 = arith.constant 1 : index
    %c0_182 = arith.constant 0 : index
    %370 = arith.index_cast %333 : i32 to index
    %c0_183 = arith.constant 0 : index
    %c0_184 = arith.constant 0 : index
    %371 = vector.load %arg0[%c1_181, %c0_182, %370, %c0_183, %c0_184] : memref<2x3x8x8x32xf32, #tpu.memory_space<vmem>>, vector<1x1x1x8x32xf32>
    %372 = vector.shape_cast %371 : vector<1x1x1x8x32xf32> to vector<8x32xf32>
    %c1_185 = arith.constant 1 : index
    %c1_186 = arith.constant 1 : index
    %373 = arith.index_cast %333 : i32 to index
    %c0_187 = arith.constant 0 : index
    %c0_188 = arith.constant 0 : index
    %374 = vector.load %arg0[%c1_185, %c1_186, %373, %c0_187, %c0_188] : memref<2x3x8x8x32xf32, #tpu.memory_space<vmem>>, vector<1x1x1x8x32xf32>
    %375 = vector.shape_cast %374 : vector<1x1x1x8x32xf32> to vector<8x32xf32>
    %c1_189 = arith.constant 1 : index
    %c2_190 = arith.constant 2 : index
    %376 = arith.index_cast %333 : i32 to index
    %c0_191 = arith.constant 0 : index
    %c0_192 = arith.constant 0 : index
    %377 = vector.load %arg0[%c1_189, %c2_190, %376, %c0_191, %c0_192] : memref<2x3x8x8x32xf32, #tpu.memory_space<vmem>>, vector<1x1x1x8x32xf32>
    %378 = vector.shape_cast %377 : vector<1x1x1x8x32xf32> to vector<8x32xf32>
    %379 = arith.truncf %324 : vector<8x32xf32> to vector<8x32xbf16>
    %cst_193 = arith.constant dense<0.000000e+00> : vector<8x96xf32>
    %380 = tpu.matmul %379, %3, %cst_193 {dimension_numbers = #tpu.dot_dimension_numbers<[1], [0], [0], [1], [0, 0, 1, 1], [], []>} : vector<8x32xbf16>, vector<32x96xbf16>, vector<8x96xf32> -> vector<8x96xf32>
    %381 = vector.extract_strided_slice %380 {offsets = [0, 0], sizes = [8, 32], strides = [1, 1]} : vector<8x96xf32> to vector<8x32xf32>
    %382 = arith.addf %372, %381 : vector<8x32xf32>
    %383 = arith.negf %382 : vector<8x32xf32>
    %384 = math.exp %383 : vector<8x32xf32>
    %cst_194 = arith.constant 1.000000e+00 : f32
    %385 = vector.broadcast %cst_194 : f32 to vector<8x32xf32>
    %386 = arith.addf %385, %384 : vector<8x32xf32>
    %387 = arith.divf %385, %386 : vector<8x32xf32>
    %388 = vector.extract_strided_slice %380 {offsets = [0, 32], sizes = [8, 32], strides = [1, 1]} : vector<8x96xf32> to vector<8x32xf32>
    %389 = arith.addf %375, %388 : vector<8x32xf32>
    %390 = arith.negf %389 : vector<8x32xf32>
    %391 = math.exp %390 : vector<8x32xf32>
    %cst_195 = arith.constant 1.000000e+00 : f32
    %392 = vector.broadcast %cst_195 : f32 to vector<8x32xf32>
    %393 = arith.addf %392, %391 : vector<8x32xf32>
    %394 = arith.divf %392, %393 : vector<8x32xf32>
    %395 = vector.extract_strided_slice %380 {offsets = [0, 64], sizes = [8, 32], strides = [1, 1]} : vector<8x96xf32> to vector<8x32xf32>
    %396 = vector.broadcast %7 : vector<1x32xf32> to vector<8x32xf32>
    %397 = arith.addf %395, %396 : vector<8x32xf32>
    %398 = arith.mulf %387, %397 : vector<8x32xf32>
    %399 = arith.addf %378, %398 : vector<8x32xf32>
    %400 = math.tanh %399 : vector<8x32xf32>
    %cst_196 = arith.constant 1.000000e+00 : f32
    %401 = vector.broadcast %cst_196 : f32 to vector<8x32xf32>
    %402 = arith.subf %401, %394 : vector<8x32xf32>
    %403 = arith.mulf %402, %400 : vector<8x32xf32>
    %404 = arith.mulf %394, %324 : vector<8x32xf32>
    %405 = arith.addf %403, %404 : vector<8x32xf32>
    %c0_197 = arith.constant 0 : index
    %406 = arith.index_cast %c4_i32 : i32 to index
    %c0_198 = arith.constant 0 : index
    %c0_199 = arith.constant 0 : index
    %407 = vector.load %arg3[%c0_197, %406, %c0_198, %c0_199] : memref<2x8x8x32xf32, #tpu.memory_space<vmem>>, vector<1x1x8x32xf32>
    %408 = vector.shape_cast %407 : vector<1x1x8x32xf32> to vector<8x32xf32>
    %409 = vector.shape_cast %369 : vector<8x32xf32> to vector<1x1x8x32xf32>
    tpu.vector_store %arg3[%c0_197, %406, %c0_198, %c0_199], %409 {strides = array<i32>} : memref<2x8x8x32xf32, #tpu.memory_space<vmem>>, vector<1x1x8x32xf32>,
    %c1_200 = arith.constant 1 : index
    %410 = arith.index_cast %333 : i32 to index
    %c0_201 = arith.constant 0 : index
    %c0_202 = arith.constant 0 : index
    %411 = vector.load %arg3[%c1_200, %410, %c0_201, %c0_202] : memref<2x8x8x32xf32, #tpu.memory_space<vmem>>, vector<1x1x8x32xf32>
    %412 = vector.shape_cast %411 : vector<1x1x8x32xf32> to vector<8x32xf32>
    %413 = vector.shape_cast %405 : vector<8x32xf32> to vector<1x1x8x32xf32>
    tpu.vector_store %arg3[%c1_200, %410, %c0_201, %c0_202], %413 {strides = array<i32>} : memref<2x8x8x32xf32, #tpu.memory_space<vmem>>, vector<1x1x8x32xf32>,
    %c5_i32 = arith.constant 5 : i32
    %c7_i32_203 = arith.constant 7 : i32
    %414 = arith.subi %c7_i32_203, %c5_i32 : i32
    %c0_204 = arith.constant 0 : index
    %c0_205 = arith.constant 0 : index
    %415 = arith.index_cast %c5_i32 : i32 to index
    %c0_206 = arith.constant 0 : index
    %c0_207 = arith.constant 0 : index
    %416 = vector.load %arg0[%c0_204, %c0_205, %415, %c0_206, %c0_207] : memref<2x3x8x8x32xf32, #tpu.memory_space<vmem>>, vector<1x1x1x8x32xf32>
    %417 = vector.shape_cast %416 : vector<1x1x1x8x32xf32> to vector<8x32xf32>
    %c0_208 = arith.constant 0 : index
    %c1_209 = arith.constant 1 : index
    %418 = arith.index_cast %c5_i32 : i32 to index
    %c0_210 = arith.constant 0 : index
    %c0_211 = arith.constant 0 : index
    %419 = vector.load %arg0[%c0_208, %c1_209, %418, %c0_210, %c0_211] : memref<2x3x8x8x32xf32, #tpu.memory_space<vmem>>, vector<1x1x1x8x32xf32>
    %420 = vector.shape_cast %419 : vector<1x1x1x8x32xf32> to vector<8x32xf32>
    %c0_212 = arith.constant 0 : index
    %c2_213 = arith.constant 2 : index
    %421 = arith.index_cast %c5_i32 : i32 to index
    %c0_214 = arith.constant 0 : index
    %c0_215 = arith.constant 0 : index
    %422 = vector.load %arg0[%c0_212, %c2_213, %421, %c0_214, %c0_215] : memref<2x3x8x8x32xf32, #tpu.memory_space<vmem>>, vector<1x1x1x8x32xf32>
    %423 = vector.shape_cast %422 : vector<1x1x1x8x32xf32> to vector<8x32xf32>
    %424 = arith.truncf %369 : vector<8x32xf32> to vector<8x32xbf16>
    %cst_216 = arith.constant dense<0.000000e+00> : vector<8x96xf32>
    %425 = tpu.matmul %424, %1, %cst_216 {dimension_numbers = #tpu.dot_dimension_numbers<[1], [0], [0], [1], [0, 0, 1, 1], [], []>} : vector<8x32xbf16>, vector<32x96xbf16>, vector<8x96xf32> -> vector<8x96xf32>
    %426 = vector.extract_strided_slice %425 {offsets = [0, 0], sizes = [8, 32], strides = [1, 1]} : vector<8x96xf32> to vector<8x32xf32>
    %427 = arith.addf %417, %426 : vector<8x32xf32>
    %428 = arith.negf %427 : vector<8x32xf32>
    %429 = math.exp %428 : vector<8x32xf32>
    %cst_217 = arith.constant 1.000000e+00 : f32
    %430 = vector.broadcast %cst_217 : f32 to vector<8x32xf32>
    %431 = arith.addf %430, %429 : vector<8x32xf32>
    %432 = arith.divf %430, %431 : vector<8x32xf32>
    %433 = vector.extract_strided_slice %425 {offsets = [0, 32], sizes = [8, 32], strides = [1, 1]} : vector<8x96xf32> to vector<8x32xf32>
    %434 = arith.addf %420, %433 : vector<8x32xf32>
    %435 = arith.negf %434 : vector<8x32xf32>
    %436 = math.exp %435 : vector<8x32xf32>
    %cst_218 = arith.constant 1.000000e+00 : f32
    %437 = vector.broadcast %cst_218 : f32 to vector<8x32xf32>
    %438 = arith.addf %437, %436 : vector<8x32xf32>
    %439 = arith.divf %437, %438 : vector<8x32xf32>
    %440 = vector.extract_strided_slice %425 {offsets = [0, 64], sizes = [8, 32], strides = [1, 1]} : vector<8x96xf32> to vector<8x32xf32>
    %441 = vector.broadcast %5 : vector<1x32xf32> to vector<8x32xf32>
    %442 = arith.addf %440, %441 : vector<8x32xf32>
    %443 = arith.mulf %432, %442 : vector<8x32xf32>
    %444 = arith.addf %423, %443 : vector<8x32xf32>
    %445 = math.tanh %444 : vector<8x32xf32>
    %cst_219 = arith.constant 1.000000e+00 : f32
    %446 = vector.broadcast %cst_219 : f32 to vector<8x32xf32>
    %447 = arith.subf %446, %439 : vector<8x32xf32>
    %448 = arith.mulf %447, %445 : vector<8x32xf32>
    %449 = arith.mulf %439, %369 : vector<8x32xf32>
    %450 = arith.addf %448, %449 : vector<8x32xf32>
    %c1_220 = arith.constant 1 : index
    %c0_221 = arith.constant 0 : index
    %451 = arith.index_cast %414 : i32 to index
    %c0_222 = arith.constant 0 : index
    %c0_223 = arith.constant 0 : index
    %452 = vector.load %arg0[%c1_220, %c0_221, %451, %c0_222, %c0_223] : memref<2x3x8x8x32xf32, #tpu.memory_space<vmem>>, vector<1x1x1x8x32xf32>
    %453 = vector.shape_cast %452 : vector<1x1x1x8x32xf32> to vector<8x32xf32>
    %c1_224 = arith.constant 1 : index
    %c1_225 = arith.constant 1 : index
    %454 = arith.index_cast %414 : i32 to index
    %c0_226 = arith.constant 0 : index
    %c0_227 = arith.constant 0 : index
    %455 = vector.load %arg0[%c1_224, %c1_225, %454, %c0_226, %c0_227] : memref<2x3x8x8x32xf32, #tpu.memory_space<vmem>>, vector<1x1x1x8x32xf32>
    %456 = vector.shape_cast %455 : vector<1x1x1x8x32xf32> to vector<8x32xf32>
    %c1_228 = arith.constant 1 : index
    %c2_229 = arith.constant 2 : index
    %457 = arith.index_cast %414 : i32 to index
    %c0_230 = arith.constant 0 : index
    %c0_231 = arith.constant 0 : index
    %458 = vector.load %arg0[%c1_228, %c2_229, %457, %c0_230, %c0_231] : memref<2x3x8x8x32xf32, #tpu.memory_space<vmem>>, vector<1x1x1x8x32xf32>
    %459 = vector.shape_cast %458 : vector<1x1x1x8x32xf32> to vector<8x32xf32>
    %460 = arith.truncf %405 : vector<8x32xf32> to vector<8x32xbf16>
    %cst_232 = arith.constant dense<0.000000e+00> : vector<8x96xf32>
    %461 = tpu.matmul %460, %3, %cst_232 {dimension_numbers = #tpu.dot_dimension_numbers<[1], [0], [0], [1], [0, 0, 1, 1], [], []>} : vector<8x32xbf16>, vector<32x96xbf16>, vector<8x96xf32> -> vector<8x96xf32>
    %462 = vector.extract_strided_slice %461 {offsets = [0, 0], sizes = [8, 32], strides = [1, 1]} : vector<8x96xf32> to vector<8x32xf32>
    %463 = arith.addf %453, %462 : vector<8x32xf32>
    %464 = arith.negf %463 : vector<8x32xf32>
    %465 = math.exp %464 : vector<8x32xf32>
    %cst_233 = arith.constant 1.000000e+00 : f32
    %466 = vector.broadcast %cst_233 : f32 to vector<8x32xf32>
    %467 = arith.addf %466, %465 : vector<8x32xf32>
    %468 = arith.divf %466, %467 : vector<8x32xf32>
    %469 = vector.extract_strided_slice %461 {offsets = [0, 32], sizes = [8, 32], strides = [1, 1]} : vector<8x96xf32> to vector<8x32xf32>
    %470 = arith.addf %456, %469 : vector<8x32xf32>
    %471 = arith.negf %470 : vector<8x32xf32>
    %472 = math.exp %471 : vector<8x32xf32>
    %cst_234 = arith.constant 1.000000e+00 : f32
    %473 = vector.broadcast %cst_234 : f32 to vector<8x32xf32>
    %474 = arith.addf %473, %472 : vector<8x32xf32>
    %475 = arith.divf %473, %474 : vector<8x32xf32>
    %476 = vector.extract_strided_slice %461 {offsets = [0, 64], sizes = [8, 32], strides = [1, 1]} : vector<8x96xf32> to vector<8x32xf32>
    %477 = vector.broadcast %7 : vector<1x32xf32> to vector<8x32xf32>
    %478 = arith.addf %476, %477 : vector<8x32xf32>
    %479 = arith.mulf %468, %478 : vector<8x32xf32>
    %480 = arith.addf %459, %479 : vector<8x32xf32>
    %481 = math.tanh %480 : vector<8x32xf32>
    %cst_235 = arith.constant 1.000000e+00 : f32
    %482 = vector.broadcast %cst_235 : f32 to vector<8x32xf32>
    %483 = arith.subf %482, %475 : vector<8x32xf32>
    %484 = arith.mulf %483, %481 : vector<8x32xf32>
    %485 = arith.mulf %475, %405 : vector<8x32xf32>
    %486 = arith.addf %484, %485 : vector<8x32xf32>
    %c0_236 = arith.constant 0 : index
    %487 = arith.index_cast %c5_i32 : i32 to index
    %c0_237 = arith.constant 0 : index
    %c0_238 = arith.constant 0 : index
    %488 = vector.load %arg3[%c0_236, %487, %c0_237, %c0_238] : memref<2x8x8x32xf32, #tpu.memory_space<vmem>>, vector<1x1x8x32xf32>
    %489 = vector.shape_cast %488 : vector<1x1x8x32xf32> to vector<8x32xf32>
    %490 = vector.shape_cast %450 : vector<8x32xf32> to vector<1x1x8x32xf32>
    tpu.vector_store %arg3[%c0_236, %487, %c0_237, %c0_238], %490 {strides = array<i32>} : memref<2x8x8x32xf32, #tpu.memory_space<vmem>>, vector<1x1x8x32xf32>,
    %c1_239 = arith.constant 1 : index
    %491 = arith.index_cast %414 : i32 to index
    %c0_240 = arith.constant 0 : index
    %c0_241 = arith.constant 0 : index
    %492 = vector.load %arg3[%c1_239, %491, %c0_240, %c0_241] : memref<2x8x8x32xf32, #tpu.memory_space<vmem>>, vector<1x1x8x32xf32>
    %493 = vector.shape_cast %492 : vector<1x1x8x32xf32> to vector<8x32xf32>
    %494 = vector.shape_cast %486 : vector<8x32xf32> to vector<1x1x8x32xf32>
    tpu.vector_store %arg3[%c1_239, %491, %c0_240, %c0_241], %494 {strides = array<i32>} : memref<2x8x8x32xf32, #tpu.memory_space<vmem>>, vector<1x1x8x32xf32>,
    %c6_i32 = arith.constant 6 : i32
    %c7_i32_242 = arith.constant 7 : i32
    %495 = arith.subi %c7_i32_242, %c6_i32 : i32
    %c0_243 = arith.constant 0 : index
    %c0_244 = arith.constant 0 : index
    %496 = arith.index_cast %c6_i32 : i32 to index
    %c0_245 = arith.constant 0 : index
    %c0_246 = arith.constant 0 : index
    %497 = vector.load %arg0[%c0_243, %c0_244, %496, %c0_245, %c0_246] : memref<2x3x8x8x32xf32, #tpu.memory_space<vmem>>, vector<1x1x1x8x32xf32>
    %498 = vector.shape_cast %497 : vector<1x1x1x8x32xf32> to vector<8x32xf32>
    %c0_247 = arith.constant 0 : index
    %c1_248 = arith.constant 1 : index
    %499 = arith.index_cast %c6_i32 : i32 to index
    %c0_249 = arith.constant 0 : index
    %c0_250 = arith.constant 0 : index
    %500 = vector.load %arg0[%c0_247, %c1_248, %499, %c0_249, %c0_250] : memref<2x3x8x8x32xf32, #tpu.memory_space<vmem>>, vector<1x1x1x8x32xf32>
    %501 = vector.shape_cast %500 : vector<1x1x1x8x32xf32> to vector<8x32xf32>
    %c0_251 = arith.constant 0 : index
    %c2_252 = arith.constant 2 : index
    %502 = arith.index_cast %c6_i32 : i32 to index
    %c0_253 = arith.constant 0 : index
    %c0_254 = arith.constant 0 : index
    %503 = vector.load %arg0[%c0_251, %c2_252, %502, %c0_253, %c0_254] : memref<2x3x8x8x32xf32, #tpu.memory_space<vmem>>, vector<1x1x1x8x32xf32>
    %504 = vector.shape_cast %503 : vector<1x1x1x8x32xf32> to vector<8x32xf32>
    %505 = arith.truncf %450 : vector<8x32xf32> to vector<8x32xbf16>
    %cst_255 = arith.constant dense<0.000000e+00> : vector<8x96xf32>
    %506 = tpu.matmul %505, %1, %cst_255 {dimension_numbers = #tpu.dot_dimension_numbers<[1], [0], [0], [1], [0, 0, 1, 1], [], []>} : vector<8x32xbf16>, vector<32x96xbf16>, vector<8x96xf32> -> vector<8x96xf32>
    %507 = vector.extract_strided_slice %506 {offsets = [0, 0], sizes = [8, 32], strides = [1, 1]} : vector<8x96xf32> to vector<8x32xf32>
    %508 = arith.addf %498, %507 : vector<8x32xf32>
    %509 = arith.negf %508 : vector<8x32xf32>
    %510 = math.exp %509 : vector<8x32xf32>
    %cst_256 = arith.constant 1.000000e+00 : f32
    %511 = vector.broadcast %cst_256 : f32 to vector<8x32xf32>
    %512 = arith.addf %511, %510 : vector<8x32xf32>
    %513 = arith.divf %511, %512 : vector<8x32xf32>
    %514 = vector.extract_strided_slice %506 {offsets = [0, 32], sizes = [8, 32], strides = [1, 1]} : vector<8x96xf32> to vector<8x32xf32>
    %515 = arith.addf %501, %514 : vector<8x32xf32>
    %516 = arith.negf %515 : vector<8x32xf32>
    %517 = math.exp %516 : vector<8x32xf32>
    %cst_257 = arith.constant 1.000000e+00 : f32
    %518 = vector.broadcast %cst_257 : f32 to vector<8x32xf32>
    %519 = arith.addf %518, %517 : vector<8x32xf32>
    %520 = arith.divf %518, %519 : vector<8x32xf32>
    %521 = vector.extract_strided_slice %506 {offsets = [0, 64], sizes = [8, 32], strides = [1, 1]} : vector<8x96xf32> to vector<8x32xf32>
    %522 = vector.broadcast %5 : vector<1x32xf32> to vector<8x32xf32>
    %523 = arith.addf %521, %522 : vector<8x32xf32>
    %524 = arith.mulf %513, %523 : vector<8x32xf32>
    %525 = arith.addf %504, %524 : vector<8x32xf32>
    %526 = math.tanh %525 : vector<8x32xf32>
    %cst_258 = arith.constant 1.000000e+00 : f32
    %527 = vector.broadcast %cst_258 : f32 to vector<8x32xf32>
    %528 = arith.subf %527, %520 : vector<8x32xf32>
    %529 = arith.mulf %528, %526 : vector<8x32xf32>
    %530 = arith.mulf %520, %450 : vector<8x32xf32>
    %531 = arith.addf %529, %530 : vector<8x32xf32>
    %c1_259 = arith.constant 1 : index
    %c0_260 = arith.constant 0 : index
    %532 = arith.index_cast %495 : i32 to index
    %c0_261 = arith.constant 0 : index
    %c0_262 = arith.constant 0 : index
    %533 = vector.load %arg0[%c1_259, %c0_260, %532, %c0_261, %c0_262] : memref<2x3x8x8x32xf32, #tpu.memory_space<vmem>>, vector<1x1x1x8x32xf32>
    %534 = vector.shape_cast %533 : vector<1x1x1x8x32xf32> to vector<8x32xf32>
    %c1_263 = arith.constant 1 : index
    %c1_264 = arith.constant 1 : index
    %535 = arith.index_cast %495 : i32 to index
    %c0_265 = arith.constant 0 : index
    %c0_266 = arith.constant 0 : index
    %536 = vector.load %arg0[%c1_263, %c1_264, %535, %c0_265, %c0_266] : memref<2x3x8x8x32xf32, #tpu.memory_space<vmem>>, vector<1x1x1x8x32xf32>
    %537 = vector.shape_cast %536 : vector<1x1x1x8x32xf32> to vector<8x32xf32>
    %c1_267 = arith.constant 1 : index
    %c2_268 = arith.constant 2 : index
    %538 = arith.index_cast %495 : i32 to index
    %c0_269 = arith.constant 0 : index
    %c0_270 = arith.constant 0 : index
    %539 = vector.load %arg0[%c1_267, %c2_268, %538, %c0_269, %c0_270] : memref<2x3x8x8x32xf32, #tpu.memory_space<vmem>>, vector<1x1x1x8x32xf32>
    %540 = vector.shape_cast %539 : vector<1x1x1x8x32xf32> to vector<8x32xf32>
    %541 = arith.truncf %486 : vector<8x32xf32> to vector<8x32xbf16>
    %cst_271 = arith.constant dense<0.000000e+00> : vector<8x96xf32>
    %542 = tpu.matmul %541, %3, %cst_271 {dimension_numbers = #tpu.dot_dimension_numbers<[1], [0], [0], [1], [0, 0, 1, 1], [], []>} : vector<8x32xbf16>, vector<32x96xbf16>, vector<8x96xf32> -> vector<8x96xf32>
    %543 = vector.extract_strided_slice %542 {offsets = [0, 0], sizes = [8, 32], strides = [1, 1]} : vector<8x96xf32> to vector<8x32xf32>
    %544 = arith.addf %534, %543 : vector<8x32xf32>
    %545 = arith.negf %544 : vector<8x32xf32>
    %546 = math.exp %545 : vector<8x32xf32>
    %cst_272 = arith.constant 1.000000e+00 : f32
    %547 = vector.broadcast %cst_272 : f32 to vector<8x32xf32>
    %548 = arith.addf %547, %546 : vector<8x32xf32>
    %549 = arith.divf %547, %548 : vector<8x32xf32>
    %550 = vector.extract_strided_slice %542 {offsets = [0, 32], sizes = [8, 32], strides = [1, 1]} : vector<8x96xf32> to vector<8x32xf32>
    %551 = arith.addf %537, %550 : vector<8x32xf32>
    %552 = arith.negf %551 : vector<8x32xf32>
    %553 = math.exp %552 : vector<8x32xf32>
    %cst_273 = arith.constant 1.000000e+00 : f32
    %554 = vector.broadcast %cst_273 : f32 to vector<8x32xf32>
    %555 = arith.addf %554, %553 : vector<8x32xf32>
    %556 = arith.divf %554, %555 : vector<8x32xf32>
    %557 = vector.extract_strided_slice %542 {offsets = [0, 64], sizes = [8, 32], strides = [1, 1]} : vector<8x96xf32> to vector<8x32xf32>
    %558 = vector.broadcast %7 : vector<1x32xf32> to vector<8x32xf32>
    %559 = arith.addf %557, %558 : vector<8x32xf32>
    %560 = arith.mulf %549, %559 : vector<8x32xf32>
    %561 = arith.addf %540, %560 : vector<8x32xf32>
    %562 = math.tanh %561 : vector<8x32xf32>
    %cst_274 = arith.constant 1.000000e+00 : f32
    %563 = vector.broadcast %cst_274 : f32 to vector<8x32xf32>
    %564 = arith.subf %563, %556 : vector<8x32xf32>
    %565 = arith.mulf %564, %562 : vector<8x32xf32>
    %566 = arith.mulf %556, %486 : vector<8x32xf32>
    %567 = arith.addf %565, %566 : vector<8x32xf32>
    %c0_275 = arith.constant 0 : index
    %568 = arith.index_cast %c6_i32 : i32 to index
    %c0_276 = arith.constant 0 : index
    %c0_277 = arith.constant 0 : index
    %569 = vector.load %arg3[%c0_275, %568, %c0_276, %c0_277] : memref<2x8x8x32xf32, #tpu.memory_space<vmem>>, vector<1x1x8x32xf32>
    %570 = vector.shape_cast %569 : vector<1x1x8x32xf32> to vector<8x32xf32>
    %571 = vector.shape_cast %531 : vector<8x32xf32> to vector<1x1x8x32xf32>
    tpu.vector_store %arg3[%c0_275, %568, %c0_276, %c0_277], %571 {strides = array<i32>} : memref<2x8x8x32xf32, #tpu.memory_space<vmem>>, vector<1x1x8x32xf32>,
    %c1_278 = arith.constant 1 : index
    %572 = arith.index_cast %495 : i32 to index
    %c0_279 = arith.constant 0 : index
    %c0_280 = arith.constant 0 : index
    %573 = vector.load %arg3[%c1_278, %572, %c0_279, %c0_280] : memref<2x8x8x32xf32, #tpu.memory_space<vmem>>, vector<1x1x8x32xf32>
    %574 = vector.shape_cast %573 : vector<1x1x8x32xf32> to vector<8x32xf32>
    %575 = vector.shape_cast %567 : vector<8x32xf32> to vector<1x1x8x32xf32>
    tpu.vector_store %arg3[%c1_278, %572, %c0_279, %c0_280], %575 {strides = array<i32>} : memref<2x8x8x32xf32, #tpu.memory_space<vmem>>, vector<1x1x8x32xf32>,
    %c7_i32_281 = arith.constant 7 : i32
    %c7_i32_282 = arith.constant 7 : i32
    %576 = arith.subi %c7_i32_282, %c7_i32_281 : i32
    %c0_283 = arith.constant 0 : index
    %c0_284 = arith.constant 0 : index
    %577 = arith.index_cast %c7_i32_281 : i32 to index
    %c0_285 = arith.constant 0 : index
    %c0_286 = arith.constant 0 : index
    %578 = vector.load %arg0[%c0_283, %c0_284, %577, %c0_285, %c0_286] : memref<2x3x8x8x32xf32, #tpu.memory_space<vmem>>, vector<1x1x1x8x32xf32>
    %579 = vector.shape_cast %578 : vector<1x1x1x8x32xf32> to vector<8x32xf32>
    %c0_287 = arith.constant 0 : index
    %c1_288 = arith.constant 1 : index
    %580 = arith.index_cast %c7_i32_281 : i32 to index
    %c0_289 = arith.constant 0 : index
    %c0_290 = arith.constant 0 : index
    %581 = vector.load %arg0[%c0_287, %c1_288, %580, %c0_289, %c0_290] : memref<2x3x8x8x32xf32, #tpu.memory_space<vmem>>, vector<1x1x1x8x32xf32>
    %582 = vector.shape_cast %581 : vector<1x1x1x8x32xf32> to vector<8x32xf32>
    %c0_291 = arith.constant 0 : index
    %c2_292 = arith.constant 2 : index
    %583 = arith.index_cast %c7_i32_281 : i32 to index
    %c0_293 = arith.constant 0 : index
    %c0_294 = arith.constant 0 : index
    %584 = vector.load %arg0[%c0_291, %c2_292, %583, %c0_293, %c0_294] : memref<2x3x8x8x32xf32, #tpu.memory_space<vmem>>, vector<1x1x1x8x32xf32>
    %585 = vector.shape_cast %584 : vector<1x1x1x8x32xf32> to vector<8x32xf32>
    %586 = arith.truncf %531 : vector<8x32xf32> to vector<8x32xbf16>
    %cst_295 = arith.constant dense<0.000000e+00> : vector<8x96xf32>
    %587 = tpu.matmul %586, %1, %cst_295 {dimension_numbers = #tpu.dot_dimension_numbers<[1], [0], [0], [1], [0, 0, 1, 1], [], []>} : vector<8x32xbf16>, vector<32x96xbf16>, vector<8x96xf32> -> vector<8x96xf32>
    %588 = vector.extract_strided_slice %587 {offsets = [0, 0], sizes = [8, 32], strides = [1, 1]} : vector<8x96xf32> to vector<8x32xf32>
    %589 = arith.addf %579, %588 : vector<8x32xf32>
    %590 = arith.negf %589 : vector<8x32xf32>
    %591 = math.exp %590 : vector<8x32xf32>
    %cst_296 = arith.constant 1.000000e+00 : f32
    %592 = vector.broadcast %cst_296 : f32 to vector<8x32xf32>
    %593 = arith.addf %592, %591 : vector<8x32xf32>
    %594 = arith.divf %592, %593 : vector<8x32xf32>
    %595 = vector.extract_strided_slice %587 {offsets = [0, 32], sizes = [8, 32], strides = [1, 1]} : vector<8x96xf32> to vector<8x32xf32>
    %596 = arith.addf %582, %595 : vector<8x32xf32>
    %597 = arith.negf %596 : vector<8x32xf32>
    %598 = math.exp %597 : vector<8x32xf32>
    %cst_297 = arith.constant 1.000000e+00 : f32
    %599 = vector.broadcast %cst_297 : f32 to vector<8x32xf32>
    %600 = arith.addf %599, %598 : vector<8x32xf32>
    %601 = arith.divf %599, %600 : vector<8x32xf32>
    %602 = vector.extract_strided_slice %587 {offsets = [0, 64], sizes = [8, 32], strides = [1, 1]} : vector<8x96xf32> to vector<8x32xf32>
    %603 = vector.broadcast %5 : vector<1x32xf32> to vector<8x32xf32>
    %604 = arith.addf %602, %603 : vector<8x32xf32>
    %605 = arith.mulf %594, %604 : vector<8x32xf32>
    %606 = arith.addf %585, %605 : vector<8x32xf32>
    %607 = math.tanh %606 : vector<8x32xf32>
    %cst_298 = arith.constant 1.000000e+00 : f32
    %608 = vector.broadcast %cst_298 : f32 to vector<8x32xf32>
    %609 = arith.subf %608, %601 : vector<8x32xf32>
    %610 = arith.mulf %609, %607 : vector<8x32xf32>
    %611 = arith.mulf %601, %531 : vector<8x32xf32>
    %612 = arith.addf %610, %611 : vector<8x32xf32>
    %c1_299 = arith.constant 1 : index
    %c0_300 = arith.constant 0 : index
    %613 = arith.index_cast %576 : i32 to index
    %c0_301 = arith.constant 0 : index
    %c0_302 = arith.constant 0 : index
    %614 = vector.load %arg0[%c1_299, %c0_300, %613, %c0_301, %c0_302] : memref<2x3x8x8x32xf32, #tpu.memory_space<vmem>>, vector<1x1x1x8x32xf32>
    %615 = vector.shape_cast %614 : vector<1x1x1x8x32xf32> to vector<8x32xf32>
    %c1_303 = arith.constant 1 : index
    %c1_304 = arith.constant 1 : index
    %616 = arith.index_cast %576 : i32 to index
    %c0_305 = arith.constant 0 : index
    %c0_306 = arith.constant 0 : index
    %617 = vector.load %arg0[%c1_303, %c1_304, %616, %c0_305, %c0_306] : memref<2x3x8x8x32xf32, #tpu.memory_space<vmem>>, vector<1x1x1x8x32xf32>
    %618 = vector.shape_cast %617 : vector<1x1x1x8x32xf32> to vector<8x32xf32>
    %c1_307 = arith.constant 1 : index
    %c2_308 = arith.constant 2 : index
    %619 = arith.index_cast %576 : i32 to index
    %c0_309 = arith.constant 0 : index
    %c0_310 = arith.constant 0 : index
    %620 = vector.load %arg0[%c1_307, %c2_308, %619, %c0_309, %c0_310] : memref<2x3x8x8x32xf32, #tpu.memory_space<vmem>>, vector<1x1x1x8x32xf32>
    %621 = vector.shape_cast %620 : vector<1x1x1x8x32xf32> to vector<8x32xf32>
    %622 = arith.truncf %567 : vector<8x32xf32> to vector<8x32xbf16>
    %cst_311 = arith.constant dense<0.000000e+00> : vector<8x96xf32>
    %623 = tpu.matmul %622, %3, %cst_311 {dimension_numbers = #tpu.dot_dimension_numbers<[1], [0], [0], [1], [0, 0, 1, 1], [], []>} : vector<8x32xbf16>, vector<32x96xbf16>, vector<8x96xf32> -> vector<8x96xf32>
    %624 = vector.extract_strided_slice %623 {offsets = [0, 0], sizes = [8, 32], strides = [1, 1]} : vector<8x96xf32> to vector<8x32xf32>
    %625 = arith.addf %615, %624 : vector<8x32xf32>
    %626 = arith.negf %625 : vector<8x32xf32>
    %627 = math.exp %626 : vector<8x32xf32>
    %cst_312 = arith.constant 1.000000e+00 : f32
    %628 = vector.broadcast %cst_312 : f32 to vector<8x32xf32>
    %629 = arith.addf %628, %627 : vector<8x32xf32>
    %630 = arith.divf %628, %629 : vector<8x32xf32>
    %631 = vector.extract_strided_slice %623 {offsets = [0, 32], sizes = [8, 32], strides = [1, 1]} : vector<8x96xf32> to vector<8x32xf32>
    %632 = arith.addf %618, %631 : vector<8x32xf32>
    %633 = arith.negf %632 : vector<8x32xf32>
    %634 = math.exp %633 : vector<8x32xf32>
    %cst_313 = arith.constant 1.000000e+00 : f32
    %635 = vector.broadcast %cst_313 : f32 to vector<8x32xf32>
    %636 = arith.addf %635, %634 : vector<8x32xf32>
    %637 = arith.divf %635, %636 : vector<8x32xf32>
    %638 = vector.extract_strided_slice %623 {offsets = [0, 64], sizes = [8, 32], strides = [1, 1]} : vector<8x96xf32> to vector<8x32xf32>
    %639 = vector.broadcast %7 : vector<1x32xf32> to vector<8x32xf32>
    %640 = arith.addf %638, %639 : vector<8x32xf32>
    %641 = arith.mulf %630, %640 : vector<8x32xf32>
    %642 = arith.addf %621, %641 : vector<8x32xf32>
    %643 = math.tanh %642 : vector<8x32xf32>
    %cst_314 = arith.constant 1.000000e+00 : f32
    %644 = vector.broadcast %cst_314 : f32 to vector<8x32xf32>
    %645 = arith.subf %644, %637 : vector<8x32xf32>
    %646 = arith.mulf %645, %643 : vector<8x32xf32>
    %647 = arith.mulf %637, %567 : vector<8x32xf32>
    %648 = arith.addf %646, %647 : vector<8x32xf32>
    %c0_315 = arith.constant 0 : index
    %649 = arith.index_cast %c7_i32_281 : i32 to index
    %c0_316 = arith.constant 0 : index
    %c0_317 = arith.constant 0 : index
    %650 = vector.load %arg3[%c0_315, %649, %c0_316, %c0_317] : memref<2x8x8x32xf32, #tpu.memory_space<vmem>>, vector<1x1x8x32xf32>
    %651 = vector.shape_cast %650 : vector<1x1x8x32xf32> to vector<8x32xf32>
    %652 = vector.shape_cast %612 : vector<8x32xf32> to vector<1x1x8x32xf32>
    tpu.vector_store %arg3[%c0_315, %649, %c0_316, %c0_317], %652 {strides = array<i32>} : memref<2x8x8x32xf32, #tpu.memory_space<vmem>>, vector<1x1x8x32xf32>,
    %c1_318 = arith.constant 1 : index
    %653 = arith.index_cast %576 : i32 to index
    %c0_319 = arith.constant 0 : index
    %c0_320 = arith.constant 0 : index
    %654 = vector.load %arg3[%c1_318, %653, %c0_319, %c0_320] : memref<2x8x8x32xf32, #tpu.memory_space<vmem>>, vector<1x1x8x32xf32>
    %655 = vector.shape_cast %654 : vector<1x1x8x32xf32> to vector<8x32xf32>
    %656 = vector.shape_cast %648 : vector<8x32xf32> to vector<1x1x8x32xf32>
    tpu.vector_store %arg3[%c1_318, %653, %c0_319, %c0_320], %656 {strides = array<i32>} : memref<2x8x8x32xf32, #tpu.memory_space<vmem>>, vector<1x1x8x32xf32>,
    %c8_i32 = arith.constant 8 : i32
    return
  }
}

</mosaic_0001>

<llo_original>
// kernel: encoder_forward.2
$region0: #{encoder_forward.2}
  #allocation0 [shape = 'u32[]', space=smem, size = 0x4, offset = 0x4, fixed_abs, tag = 'smem constant byte address 0x4 - core index']
  #allocation1 [shape = 'u32[144,128]{1,0:T(1,128)}', space=vmem, size = 0x12000, scoped, tag = 'internal scratch']
  %s0 = inlined_call_operand.vmem [shape: f32[2,3,8,8,32], index: 0, kind: input, shape index: {}]
  %s1 = inlined_call_operand.vmem [shape: bf16[2,32,96], index: 1, kind: input, shape index: {}]
  %s2 = inlined_call_operand.vmem [shape: f32[2,1,32], index: 2, kind: input, shape index: {}]
  %s3 = inlined_call_operand.vmem [shape: f32[2,8,8,32], index: 3, kind: output, shape index: {}]
  %s4 = sld [smem:[#allocation0]]
  $region22: #{encoder_forward.2} parent=0
    _
  %s6 = ssub.s32 1, %s4
  %s7 = scalar_select 0, %s6, %s4
  // Predicated region
  $region2: #{encoder_forward.2} parent=0 // pred_check
    _
  $region3: #{encoder_forward.2} parent=0 // pred_check_branch
    %9 = sbr.rel (0) target = $region5
  $region4: #{encoder_forward.2} parent=0 // pred_region
    _
  $region5: #{encoder_forward.2} parent=0 // pred_fallthru
    _
  // Predicated region
  $region6: #{encoder_forward.2} parent=0 // pred_check
    _
  $region7: #{encoder_forward.2} parent=0 // pred_check_branch
    %11 = sbr.rel (0) target = $region9
  $region8: #{encoder_forward.2} parent=0 // pred_region
    _
  $region9: #{encoder_forward.2} parent=0 // pred_fallthru
    _
  // Predicated region
  $region10: #{encoder_forward.2} parent=0 // pred_check
    _
  $region11: #{encoder_forward.2} parent=0 // pred_check_branch
    %13 = sbr.rel (0) target = $region13
  $region12: #{encoder_forward.2} parent=0 // pred_region
    _
  $region13: #{encoder_forward.2} parent=0 // pred_fallthru
    _
  %v15 = vld [vmem:[%s1] sm:$0xf]
  %v16 = vld [vmem:[%s1 + $0x4] sm:$0xf]
  %v17 = vld [vmem:[%s1 + $0x8] sm:$0xf]
  %v18 = vld [vmem:[%s1 + $0xc] sm:$0xf]
  %s19 = scalar_lea.vmem %s1, 16
  %v20 = vld [vmem:[%s19] sm:$0xf]
  %v21 = vld [vmem:[%s19 + $0x4] sm:$0xf]
  %v22 = vld [vmem:[%s19 + $0x8] sm:$0xf]
  %v23 = vld [vmem:[%s19 + $0xc] sm:$0xf]
  %v24 = vld [vmem:[%s2] sm:$0x1]
  %s25 = scalar_lea.vmem %s2, 1
  %v26 = vld [vmem:[%s25] sm:$0x1]
  %v27 = vld [vmem:[%s0] sm:$0xff]
  %s28 = scalar_lea.vmem %s0, 64
  %v29 = vld [vmem:[%s28] sm:$0xff]
  %s30 = scalar_lea.vmem %s0, 128
  %v31 = vld [vmem:[%s30] sm:$0xff]
  %v36 = vunpack.c.l.b16 %v15
  %v37 = vunpack.c.l.b16 %v16
  %v38 = vunpack.c.l.b16 %v17
  %v39 = vunpack.c.l.b16 %v18
  %v40 = vpack.c.b16 %v37, %v36
  %v41 = vpack.c.b16 %v39, %v38
  %vm44 = vcmask 261120
  %v46 = vsel %vm44, 0, 0
  %48 = vmatprep.subr.bf16.mxu0 0
  %49 = vmatpush1.bf16.msra.mxu0 0
  %50 = vmatprep.subr.bf16.mxu0 0
  %51 = vmatpush1.bf16.msra.mxu0 0
  %52 = vmatprep.subr.bf16.mxu0 0
  %53 = vmatpush1.bf16.msra.mxu0 0
  %54 = vmatprep.subr.bf16.mxu0 0
  %55 = vmatpush1.bf16.msra.mxu0 0
  %56 = vmatprep.subr.bf16.mxu0 0
  %57 = vmatpush1.bf16.msra.mxu0 0
  %58 = vmatprep.subr.bf16.mxu0 0
  %59 = vmatpush1.bf16.msra.mxu0 0
  %60 = vmatprep.subr.bf16.mxu0 0
  %61 = vmatpush1.bf16.msra.mxu0 %v41
  %62 = vmatprep.subr.bf16.mxu0 0
  %63 = vmatpush1.bf16.msra.mxu0 %v40
  %64 = vmatprep.subr.bf16.mxu0 0
  %65 = vmatpush2.bf16.msra.mxu0 0
  %66 = vmatprep.subr.bf16.mxu0 0
  %67 = vmatpush2.bf16.msra.mxu0 0
  %68 = vmatprep.subr.bf16.mxu0 0
  %69 = vmatpush2.bf16.msra.mxu0 0
  %70 = vmatprep.subr.bf16.mxu0 0
  %71 = vmatpush2.bf16.msra.mxu0 0
  %72 = vmatprep.subr.bf16.mxu0 0
  %73 = vmatpush2.bf16.msra.mxu0 0
  %74 = vmatprep.subr.bf16.mxu0 0
  %75 = vmatpush2.bf16.msra.mxu0 0
  %76 = vmatprep.subr.bf16.mxu0 0
  %77 = vmatpush2.bf16.msra.mxu0 0
  %78 = vmatprep.subr.bf16.mxu0 0
  %79 = vmatpush2.bf16.msra.mxu0 0
  %80 = vmatprep.mubr.bf16.mxu0 0
  %81 = vmatmul.mubr.bf16.gmra.mxu0 %v46
  %v82 = vpop.f32.mrf.mxu0
  %v83 = vadd.f32 0.0, %v82
  %v84 = vpop.f32.mrf.mxu0
  %v85 = vpop.f32.mrf.mxu0
  %v86 = vpop.f32.mrf.mxu0
  %87 = vdwg.mxu0
  %v88 = vadd.f32 %v27, %v83
  %v89 = vxor.u32 %v88, 2147483648
  %v90 = vmul.f32 %v89, 1.442695
  %v91 = vpow.pop %v90
  %v92 = vadd.f32 %v91, 1.0
  %v93 = vrcp.pop %v92
  %v94 = vmul.f32 1.0, %v93
  %96 = vrot.lane.b32.xlu0 %v83, 96
  %v97 = vpop.permute.xlu0 %96
  %v99 = vadd.f32 %v29, %v97
  %v100 = vxor.u32 %v99, 2147483648
  %v101 = vmul.f32 %v100, 1.442695
  %v102 = vpow.pop %v101
  %v103 = vadd.f32 %v102, 1.0
  %v104 = vrcp.pop %v103
  %v105 = vmul.f32 1.0, %v104
  %v107 = vlaneseq
  %v108 = vshrl.u32 %v107, 7
  %v109 = vsub.s32 0, %v108
  %v110 = vrot.slane %v24, %v109
  %111 = vrot.lane.b32.xlu0 %v110, 64
  %v112 = vpop.permute.xlu0 %111
  %v114 = vadd.f32 %v83, %v112
  %116 = vrot.lane.b32.xlu0 %v114, 64
  %v117 = vpop.permute.xlu0 %116
  %v119 = vmul.f32 %v94, %v117
  %v120 = vadd.f32 %v31, %v119
  %v121 = vtanh.pop %v120
  %v122 = vsub.f32 1.0, %v105
  %v123 = vmul.f32 %v122, %v121
  %v124 = vmul.f32 %v105, 0.0
  %v125 = vadd.f32 %v123, %v124
  %s126 = scalar_lea.vmem %s0, 248
  %v127 = vld [vmem:[%s126] sm:$0xff]
  %s128 = scalar_lea.vmem %s0, 312
  %v129 = vld [vmem:[%s128] sm:$0xff]
  %s130 = scalar_lea.vmem %s0, 376
  %v131 = vld [vmem:[%s130] sm:$0xff]
  %v136 = vunpack.c.l.b16 %v20
  %v137 = vunpack.c.l.b16 %v21
  %v138 = vunpack.c.l.b16 %v22
  %v139 = vunpack.c.l.b16 %v23
  %v140 = vpack.c.b16 %v137, %v136
  %v141 = vpack.c.b16 %v139, %v138
  %144 = vmatprep.subr.bf16.mxu0 0
  %145 = vmatpush1.bf16.msra.mxu0 0
  %146 = vmatprep.subr.bf16.mxu0 0
  %147 = vmatpush1.bf16.msra.mxu0 0
  %148 = vmatprep.subr.bf16.mxu0 0
  %149 = vmatpush1.bf16.msra.mxu0 0
  %150 = vmatprep.subr.bf16.mxu0 0
  %151 = vmatpush1.bf16.msra.mxu0 0
  %152 = vmatprep.subr.bf16.mxu0 0
  %153 = vmatpush1.bf16.msra.mxu0 0
  %154 = vmatprep.subr.bf16.mxu0 0
  %155 = vmatpush1.bf16.msra.mxu0 0
  %156 = vmatprep.subr.bf16.mxu0 0
  %157 = vmatpush1.bf16.msra.mxu0 %v141
  %158 = vmatprep.subr.bf16.mxu0 0
  %159 = vmatpush1.bf16.msra.mxu0 %v140
  %160 = vmatprep.subr.bf16.mxu0 0
  %161 = vmatpush2.bf16.msra.mxu0 0
  %162 = vmatprep.subr.bf16.mxu0 0
  %163 = vmatpush2.bf16.msra.mxu0 0
  %164 = vmatprep.subr.bf16.mxu0 0
  %165 = vmatpush2.bf16.msra.mxu0 0
  %166 = vmatprep.subr.bf16.mxu0 0
  %167 = vmatpush2.bf16.msra.mxu0 0
  %168 = vmatprep.subr.bf16.mxu0 0
  %169 = vmatpush2.bf16.msra.mxu0 0
  %170 = vmatprep.subr.bf16.mxu0 0
  %171 = vmatpush2.bf16.msra.mxu0 0
  %172 = vmatprep.subr.bf16.mxu0 0
  %173 = vmatpush2.bf16.msra.mxu0 0
  %174 = vmatprep.subr.bf16.mxu0 0
  %175 = vmatpush2.bf16.msra.mxu0 0
  %176 = vmatprep.mubr.bf16.mxu0 0
  %177 = vmatmul.mubr.bf16.gmra.mxu0 %v46
  %v178 = vpop.f32.mrf.mxu0
  %v179 = vadd.f32 0.0, %v178
  %v180 = vpop.f32.mrf.mxu0
  %v181 = vpop.f32.mrf.mxu0
  %v182 = vpop.f32.mrf.mxu0
  %183 = vdwg.mxu0
  %v184 = vadd.f32 %v127, %v179
  %v185 = vxor.u32 %v184, 2147483648
  %v186 = vmul.f32 %v185, 1.442695
  %v187 = vpow.pop %v186
  %v188 = vadd.f32 %v187, 1.0
  %v189 = vrcp.pop %v188
  %v190 = vmul.f32 1.0, %v189
  %192 = vrot.lane.b32.xlu0 %v179, 96
  %v193 = vpop.permute.xlu0 %192
  %v195 = vadd.f32 %v129, %v193
  %v196 = vxor.u32 %v195, 2147483648
  %v197 = vmul.f32 %v196, 1.442695
  %v198 = vpow.pop %v197
  %v199 = vadd.f32 %v198, 1.0
  %v200 = vrcp.pop %v199
  %v201 = vmul.f32 1.0, %v200
  %v203 = vlaneseq
  %v204 = vshrl.u32 %v203, 7
  %v205 = vsub.s32 0, %v204
  %v206 = vrot.slane %v26, %v205
  %207 = vrot.lane.b32.xlu0 %v206, 64
  %v208 = vpop.permute.xlu0 %207
  %v210 = vadd.f32 %v179, %v208
  %212 = vrot.lane.b32.xlu0 %v210, 64
  %v213 = vpop.permute.xlu0 %212
  %v215 = vmul.f32 %v190, %v213
  %v216 = vadd.f32 %v131, %v215
  %v217 = vtanh.pop %v216
  %v218 = vsub.f32 1.0, %v201
  %v219 = vmul.f32 %v218, %v217
  %v220 = vmul.f32 %v201, 0.0
  %v221 = vadd.f32 %v219, %v220
  %222 = vst.msk [vmem:[%s3] sm:$0xff] %vm44, %v125
  %s223 = scalar_lea.vmem %s3, 120
  %224 = vst.msk [vmem:[%s223] sm:$0xff] %vm44, %v221
  %s225 = scalar_lea.vmem %s0, 8
  %v226 = vld [vmem:[%s225] sm:$0xff]
  %s227 = scalar_lea.vmem %s0, 72
  %v228 = vld [vmem:[%s227] sm:$0xff]
  %s229 = scalar_lea.vmem %s0, 136
  %v230 = vld [vmem:[%s229] sm:$0xff]
  %v231 = vpack.c.bf16 %v125, %v125
  %v233 = vsel %vm44, %v231, 0
  %235 = vmatprep.subr.bf16.mxu0 0
  %236 = vmatpush1.bf16.msra.mxu0 0
  %237 = vmatprep.subr.bf16.mxu0 0
  %238 = vmatpush1.bf16.msra.mxu0 0
  %239 = vmatprep.subr.bf16.mxu0 0
  %240 = vmatpush1.bf16.msra.mxu0 0
  %241 = vmatprep.subr.bf16.mxu0 0
  %242 = vmatpush1.bf16.msra.mxu0 0
  %243 = vmatprep.subr.bf16.mxu0 0
  %244 = vmatpush1.bf16.msra.mxu0 0
  %245 = vmatprep.subr.bf16.mxu0 0
  %246 = vmatpush1.bf16.msra.mxu0 0
  %247 = vmatprep.subr.bf16.mxu0 0
  %248 = vmatpush1.bf16.msra.mxu0 %v41
  %249 = vmatprep.subr.bf16.mxu0 0
  %250 = vmatpush1.bf16.msra.mxu0 %v40
  %251 = vmatprep.subr.bf16.mxu0 0
  %252 = vmatpush2.bf16.msra.mxu0 0
  %253 = vmatprep.subr.bf16.mxu0 0
  %254 = vmatpush2.bf16.msra.mxu0 0
  %255 = vmatprep.subr.bf16.mxu0 0
  %256 = vmatpush2.bf16.msra.mxu0 0
  %257 = vmatprep.subr.bf16.mxu0 0
  %258 = vmatpush2.bf16.msra.mxu0 0
  %259 = vmatprep.subr.bf16.mxu0 0
  %260 = vmatpush2.bf16.msra.mxu0 0
  %261 = vmatprep.subr.bf16.mxu0 0
  %262 = vmatpush2.bf16.msra.mxu0 0
  %263 = vmatprep.subr.bf16.mxu0 0
  %264 = vmatpush2.bf16.msra.mxu0 0
  %265 = vmatprep.subr.bf16.mxu0 0
  %266 = vmatpush2.bf16.msra.mxu0 0
  %267 = vmatprep.mubr.bf16.mxu0 0
  %268 = vmatmul.mubr.bf16.gmra.mxu0 %v233
  %v269 = vpop.f32.mrf.mxu0
  %v270 = vadd.f32 0.0, %v269
  %v271 = vpop.f32.mrf.mxu0
  %v272 = vpop.f32.mrf.mxu0
  %v273 = vpop.f32.mrf.mxu0
  %274 = vdwg.mxu0
  %v275 = vadd.f32 %v226, %v270
  %v276 = vxor.u32 %v275, 2147483648
  %v277 = vmul.f32 %v276, 1.442695
  %v278 = vpow.pop %v277
  %v279 = vadd.f32 %v278, 1.0
  %v280 = vrcp.pop %v279
  %v281 = vmul.f32 1.0, %v280
  %283 = vrot.lane.b32.xlu0 %v270, 96
  %v284 = vpop.permute.xlu0 %283
  %v286 = vadd.f32 %v228, %v284
  %v287 = vxor.u32 %v286, 2147483648
  %v288 = vmul.f32 %v287, 1.442695
  %v289 = vpow.pop %v288
  %v290 = vadd.f32 %v289, 1.0
  %v291 = vrcp.pop %v290
  %v292 = vmul.f32 1.0, %v291
  %v293 = vadd.f32 %v270, %v112
  %295 = vrot.lane.b32.xlu0 %v293, 64
  %v296 = vpop.permute.xlu0 %295
  %v298 = vmul.f32 %v281, %v296
  %v299 = vadd.f32 %v230, %v298
  %v300 = vtanh.pop %v299
  %v301 = vsub.f32 1.0, %v292
  %v302 = vmul.f32 %v301, %v300
  %v303 = vmul.f32 %v292, %v125
  %v304 = vadd.f32 %v302, %v303
  %s305 = scalar_lea.vmem %s0, 240
  %v306 = vld [vmem:[%s305] sm:$0xff]
  %s307 = scalar_lea.vmem %s0, 304
  %v308 = vld [vmem:[%s307] sm:$0xff]
  %s309 = scalar_lea.vmem %s0, 368
  %v310 = vld [vmem:[%s309] sm:$0xff]
  %v311 = vpack.c.bf16 %v221, %v221
  %v313 = vsel %vm44, %v311, 0
  %315 = vmatprep.subr.bf16.mxu0 0
  %316 = vmatpush1.bf16.msra.mxu0 0
  %317 = vmatprep.subr.bf16.mxu0 0
  %318 = vmatpush1.bf16.msra.mxu0 0
  %319 = vmatprep.subr.bf16.mxu0 0
  %320 = vmatpush1.bf16.msra.mxu0 0
  %321 = vmatprep.subr.bf16.mxu0 0
  %322 = vmatpush1.bf16.msra.mxu0 0
  %323 = vmatprep.subr.bf16.mxu0 0
  %324 = vmatpush1.bf16.msra.mxu0 0
  %325 = vmatprep.subr.bf16.mxu0 0
  %326 = vmatpush1.bf16.msra.mxu0 0
  %327 = vmatprep.subr.bf16.mxu0 0
  %328 = vmatpush1.bf16.msra.mxu0 %v141
  %329 = vmatprep.subr.bf16.mxu0 0
  %330 = vmatpush1.bf16.msra.mxu0 %v140
  %331 = vmatprep.subr.bf16.mxu0 0
  %332 = vmatpush2.bf16.msra.mxu0 0
  %333 = vmatprep.subr.bf16.mxu0 0
  %334 = vmatpush2.bf16.msra.mxu0 0
  %335 = vmatprep.subr.bf16.mxu0 0
  %336 = vmatpush2.bf16.msra.mxu0 0
  %337 = vmatprep.subr.bf16.mxu0 0
  %338 = vmatpush2.bf16.msra.mxu0 0
  %339 = vmatprep.subr.bf16.mxu0 0
  %340 = vmatpush2.bf16.msra.mxu0 0
  %341 = vmatprep.subr.bf16.mxu0 0
  %342 = vmatpush2.bf16.msra.mxu0 0
  %343 = vmatprep.subr.bf16.mxu0 0
  %344 = vmatpush2.bf16.msra.mxu0 0
  %345 = vmatprep.subr.bf16.mxu0 0
  %346 = vmatpush2.bf16.msra.mxu0 0
  %347 = vmatprep.mubr.bf16.mxu0 0
  %348 = vmatmul.mubr.bf16.gmra.mxu0 %v313
  %v349 = vpop.f32.mrf.mxu0
  %v350 = vadd.f32 0.0, %v349
  %v351 = vpop.f32.mrf.mxu0
  %v352 = vpop.f32.mrf.mxu0
  %v353 = vpop.f32.mrf.mxu0
  %354 = vdwg.mxu0
  %v355 = vadd.f32 %v306, %v350
  %v356 = vxor.u32 %v355, 2147483648
  %v357 = vmul.f32 %v356, 1.442695
  %v358 = vpow.pop %v357
  %v359 = vadd.f32 %v358, 1.0
  %v360 = vrcp.pop %v359
  %v361 = vmul.f32 1.0, %v360
  %363 = vrot.lane.b32.xlu0 %v350, 96
  %v364 = vpop.permute.xlu0 %363
  %v366 = vadd.f32 %v308, %v364
  %v367 = vxor.u32 %v366, 2147483648
  %v368 = vmul.f32 %v367, 1.442695
  %v369 = vpow.pop %v368
  %v370 = vadd.f32 %v369, 1.0
  %v371 = vrcp.pop %v370
  %v372 = vmul.f32 1.0, %v371
  %v373 = vadd.f32 %v350, %v208
  %375 = vrot.lane.b32.xlu0 %v373, 64
  %v376 = vpop.permute.xlu0 %375
  %v378 = vmul.f32 %v361, %v376
  %v379 = vadd.f32 %v310, %v378
  %v380 = vtanh.pop %v379
  %v381 = vsub.f32 1.0, %v372
  %v382 = vmul.f32 %v381, %v380
  %v383 = vmul.f32 %v372, %v221
  %v384 = vadd.f32 %v382, %v383
  %s385 = scalar_lea.vmem %s3, 8
  %386 = vst.msk [vmem:[%s385] sm:$0xff] %vm44, %v304
  %s387 = scalar_lea.vmem %s3, 112
  %388 = vst.msk [vmem:[%s387] sm:$0xff] %vm44, %v384
  %s389 = scalar_lea.vmem %s0, 16
  %v390 = vld [vmem:[%s389] sm:$0xff]
  %s391 = scalar_lea.vmem %s0, 80
  %v392 = vld [vmem:[%s391] sm:$0xff]
  %s393 = scalar_lea.vmem %s0, 144
  %v394 = vld [vmem:[%s393] sm:$0xff]
  %v395 = vpack.c.bf16 %v304, %v304
  %v397 = vsel %vm44, %v395, 0
  %399 = vmatprep.subr.bf16.mxu0 0
  %400 = vmatpush1.bf16.msra.mxu0 0
  %401 = vmatprep.subr.bf16.mxu0 0
  %402 = vmatpush1.bf16.msra.mxu0 0
  %403 = vmatprep.subr.bf16.mxu0 0
  %404 = vmatpush1.bf16.msra.mxu0 0
  %405 = vmatprep.subr.bf16.mxu0 0
  %406 = vmatpush1.bf16.msra.mxu0 0
  %407 = vmatprep.subr.bf16.mxu0 0
  %408 = vmatpush1.bf16.msra.mxu0 0
  %409 = vmatprep.subr.bf16.mxu0 0
  %410 = vmatpush1.bf16.msra.mxu0 0
  %411 = vmatprep.subr.bf16.mxu0 0
  %412 = vmatpush1.bf16.msra.mxu0 %v41
  %413 = vmatprep.subr.bf16.mxu0 0
  %414 = vmatpush1.bf16.msra.mxu0 %v40
  %415 = vmatprep.subr.bf16.mxu0 0
  %416 = vmatpush2.bf16.msra.mxu0 0
  %417 = vmatprep.subr.bf16.mxu0 0
  %418 = vmatpush2.bf16.msra.mxu0 0
  %419 = vmatprep.subr.bf16.mxu0 0
  %420 = vmatpush2.bf16.msra.mxu0 0
  %421 = vmatprep.subr.bf16.mxu0 0
  %422 = vmatpush2.bf16.msra.mxu0 0
  %423 = vmatprep.subr.bf16.mxu0 0
  %424 = vmatpush2.bf16.msra.mxu0 0
  %425 = vmatprep.subr.bf16.mxu0 0
  %426 = vmatpush2.bf16.msra.mxu0 0
  %427 = vmatprep.subr.bf16.mxu0 0
  %428 = vmatpush2.bf16.msra.mxu0 0
  %429 = vmatprep.subr.bf16.mxu0 0
  %430 = vmatpush2.bf16.msra.mxu0 0
  %431 = vmatprep.mubr.bf16.mxu0 0
  %432 = vmatmul.mubr.bf16.gmra.mxu0 %v397
  %v433 = vpop.f32.mrf.mxu0
  %v434 = vadd.f32 0.0, %v433
  %v435 = vpop.f32.mrf.mxu0
  %v436 = vpop.f32.mrf.mxu0
  %v437 = vpop.f32.mrf.mxu0
  %438 = vdwg.mxu0
  %v439 = vadd.f32 %v390, %v434
  %v440 = vxor.u32 %v439, 2147483648
  %v441 = vmul.f32 %v440, 1.442695
  %v442 = vpow.pop %v441
  %v443 = vadd.f32 %v442, 1.0
  %v444 = vrcp.pop %v443
  %v445 = vmul.f32 1.0, %v444
  %447 = vrot.lane.b32.xlu0 %v434, 96
  %v448 = vpop.permute.xlu0 %447
  %v450 = vadd.f32 %v392, %v448
  %v451 = vxor.u32 %v450, 2147483648
  %v452 = vmul.f32 %v451, 1.442695
  %v453 = vpow.pop %v452
  %v454 = vadd.f32 %v453, 1.0
  %v455 = vrcp.pop %v454
  %v456 = vmul.f32 1.0, %v455
  %v457 = vadd.f32 %v434, %v112
  %459 = vrot.lane.b32.xlu0 %v457, 64
  %v460 = vpop.permute.xlu0 %459
  %v462 = vmul.f32 %v445, %v460
  %v463 = vadd.f32 %v394, %v462
  %v464 = vtanh.pop %v463
  %v465 = vsub.f32 1.0, %v456
  %v466 = vmul.f32 %v465, %v464
  %v467 = vmul.f32 %v456, %v304
  %v468 = vadd.f32 %v466, %v467
  %s469 = scalar_lea.vmem %s0, 232
  %v470 = vld [vmem:[%s469] sm:$0xff]
  %s471 = scalar_lea.vmem %s0, 296
  %v472 = vld [vmem:[%s471] sm:$0xff]
  %s473 = scalar_lea.vmem %s0, 360
  %v474 = vld [vmem:[%s473] sm:$0xff]
  %v475 = vpack.c.bf16 %v384, %v384
  %v477 = vsel %vm44, %v475, 0
  %479 = vmatprep.subr.bf16.mxu0 0
  %480 = vmatpush1.bf16.msra.mxu0 0
  %481 = vmatprep.subr.bf16.mxu0 0
  %482 = vmatpush1.bf16.msra.mxu0 0
  %483 = vmatprep.subr.bf16.mxu0 0
  %484 = vmatpush1.bf16.msra.mxu0 0
  %485 = vmatprep.subr.bf16.mxu0 0
  %486 = vmatpush1.bf16.msra.mxu0 0
  %487 = vmatprep.subr.bf16.mxu0 0
  %488 = vmatpush1.bf16.msra.mxu0 0
  %489 = vmatprep.subr.bf16.mxu0 0
  %490 = vmatpush1.bf16.msra.mxu0 0
  %491 = vmatprep.subr.bf16.mxu0 0
  %492 = vmatpush1.bf16.msra.mxu0 %v141
  %493 = vmatprep.subr.bf16.mxu0 0
  %494 = vmatpush1.bf16.msra.mxu0 %v140
  %495 = vmatprep.subr.bf16.mxu0 0
  %496 = vmatpush2.bf16.msra.mxu0 0
  %497 = vmatprep.subr.bf16.mxu0 0
  %498 = vmatpush2.bf16.msra.mxu0 0
  %499 = vmatprep.subr.bf16.mxu0 0
  %500 = vmatpush2.bf16.msra.mxu0 0
  %501 = vmatprep.subr.bf16.mxu0 0
  %502 = vmatpush2.bf16.msra.mxu0 0
  %503 = vmatprep.subr.bf16.mxu0 0
  %504 = vmatpush2.bf16.msra.mxu0 0
  %505 = vmatprep.subr.bf16.mxu0 0
  %506 = vmatpush2.bf16.msra.mxu0 0
  %507 = vmatprep.subr.bf16.mxu0 0
  %508 = vmatpush2.bf16.msra.mxu0 0
  %509 = vmatprep.subr.bf16.mxu0 0
  %510 = vmatpush2.bf16.msra.mxu0 0
  %511 = vmatprep.mubr.bf16.mxu0 0
  %512 = vmatmul.mubr.bf16.gmra.mxu0 %v477
  %v513 = vpop.f32.mrf.mxu0
  %v514 = vadd.f32 0.0, %v513
  %v515 = vpop.f32.mrf.mxu0
  %v516 = vpop.f32.mrf.mxu0
  %v517 = vpop.f32.mrf.mxu0
  %518 = vdwg.mxu0
  %v519 = vadd.f32 %v470, %v514
  %v520 = vxor.u32 %v519, 2147483648
  %v521 = vmul.f32 %v520, 1.442695
  %v522 = vpow.pop %v521
  %v523 = vadd.f32 %v522, 1.0
  %v524 = vrcp.pop %v523
  %v525 = vmul.f32 1.0, %v524
  %527 = vrot.lane.b32.xlu0 %v514, 96
  %v528 = vpop.permute.xlu0 %527
  %v530 = vadd.f32 %v472, %v528
  %v531 = vxor.u32 %v530, 2147483648
  %v532 = vmul.f32 %v531, 1.442695
  %v533 = vpow.pop %v532
  %v534 = vadd.f32 %v533, 1.0
  %v535 = vrcp.pop %v534
  %v536 = vmul.f32 1.0, %v535
  %v537 = vadd.f32 %v514, %v208
  %539 = vrot.lane.b32.xlu0 %v537, 64
  %v540 = vpop.permute.xlu0 %539
  %v542 = vmul.f32 %v525, %v540
  %v543 = vadd.f32 %v474, %v542
  %v544 = vtanh.pop %v543
  %v545 = vsub.f32 1.0, %v536
  %v546 = vmul.f32 %v545, %v544
  %v547 = vmul.f32 %v536, %v384
  %v548 = vadd.f32 %v546, %v547
  %s549 = scalar_lea.vmem %s3, 16
  %550 = vst.msk [vmem:[%s549] sm:$0xff] %vm44, %v468
  %s551 = scalar_lea.vmem %s3, 104
  %552 = vst.msk [vmem:[%s551] sm:$0xff] %vm44, %v548
  %s553 = scalar_lea.vmem %s0, 24
  %v554 = vld [vmem:[%s553] sm:$0xff]
  %s555 = scalar_lea.vmem %s0, 88
  %v556 = vld [vmem:[%s555] sm:$0xff]
  %s557 = scalar_lea.vmem %s0, 152
  %v558 = vld [vmem:[%s557] sm:$0xff]
  %v559 = vpack.c.bf16 %v468, %v468
  %v561 = vsel %vm44, %v559, 0
  %563 = vmatprep.subr.bf16.mxu0 0
  %564 = vmatpush1.bf16.msra.mxu0 0
  %565 = vmatprep.subr.bf16.mxu0 0
  %566 = vmatpush1.bf16.msra.mxu0 0
  %567 = vmatprep.subr.bf16.mxu0 0
  %568 = vmatpush1.bf16.msra.mxu0 0
  %569 = vmatprep.subr.bf16.mxu0 0
  %570 = vmatpush1.bf16.msra.mxu0 0
  %571 = vmatprep.subr.bf16.mxu0 0
  %572 = vmatpush1.bf16.msra.mxu0 0
  %573 = vmatprep.subr.bf16.mxu0 0
  %574 = vmatpush1.bf16.msra.mxu0 0
  %575 = vmatprep.subr.bf16.mxu0 0
  %576 = vmatpush1.bf16.msra.mxu0 %v41
  %577 = vmatprep.subr.bf16.mxu0 0
  %578 = vmatpush1.bf16.msra.mxu0 %v40
  %579 = vmatprep.subr.bf16.mxu0 0
  %580 = vmatpush2.bf16.msra.mxu0 0
  %581 = vmatprep.subr.bf16.mxu0 0
  %582 = vmatpush2.bf16.msra.mxu0 0
  %583 = vmatprep.subr.bf16.mxu0 0
  %584 = vmatpush2.bf16.msra.mxu0 0
  %585 = vmatprep.subr.bf16.mxu0 0
  %586 = vmatpush2.bf16.msra.mxu0 0
  %587 = vmatprep.subr.bf16.mxu0 0
  %588 = vmatpush2.bf16.msra.mxu0 0
  %589 = vmatprep.subr.bf16.mxu0 0
  %590 = vmatpush2.bf16.msra.mxu0 0
  %591 = vmatprep.subr.bf16.mxu0 0
  %592 = vmatpush2.bf16.msra.mxu0 0
  %593 = vmatprep.subr.bf16.mxu0 0
  %594 = vmatpush2.bf16.msra.mxu0 0
  %595 = vmatprep.mubr.bf16.mxu0 0
  %596 = vmatmul.mubr.bf16.gmra.mxu0 %v561
  %v597 = vpop.f32.mrf.mxu0
  %v598 = vadd.f32 0.0, %v597
  %v599 = vpop.f32.mrf.mxu0
  %v600 = vpop.f32.mrf.mxu0
  %v601 = vpop.f32.mrf.mxu0
  %602 = vdwg.mxu0
  %v603 = vadd.f32 %v554, %v598
  %v604 = vxor.u32 %v603, 2147483648
  %v605 = vmul.f32 %v604, 1.442695
  %v606 = vpow.pop %v605
  %v607 = vadd.f32 %v606, 1.0
  %v608 = vrcp.pop %v607
  %v609 = vmul.f32 1.0, %v608
  %611 = vrot.lane.b32.xlu0 %v598, 96
  %v612 = vpop.permute.xlu0 %611
  %v614 = vadd.f32 %v556, %v612
  %v615 = vxor.u32 %v614, 2147483648
  %v616 = vmul.f32 %v615, 1.442695
  %v617 = vpow.pop %v616
  %v618 = vadd.f32 %v617, 1.0
  %v619 = vrcp.pop %v618
  %v620 = vmul.f32 1.0, %v619
  %v621 = vadd.f32 %v598, %v112
  %623 = vrot.lane.b32.xlu0 %v621, 64
  %v624 = vpop.permute.xlu0 %623
  %v626 = vmul.f32 %v609, %v624
  %v627 = vadd.f32 %v558, %v626
  %v628 = vtanh.pop %v627
  %v629 = vsub.f32 1.0, %v620
  %v630 = vmul.f32 %v629, %v628
  %v631 = vmul.f32 %v620, %v468
  %v632 = vadd.f32 %v630, %v631
  %s633 = scalar_lea.vmem %s0, 224
  %v634 = vld [vmem:[%s633] sm:$0xff]
  %s635 = scalar_lea.vmem %s0, 288
  %v636 = vld [vmem:[%s635] sm:$0xff]
  %s637 = scalar_lea.vmem %s0, 352
  %v638 = vld [vmem:[%s637] sm:$0xff]
  %v639 = vpack.c.bf16 %v548, %v548
  %v641 = vsel %vm44, %v639, 0
  %643 = vmatprep.subr.bf16.mxu0 0
  %644 = vmatpush1.bf16.msra.mxu0 0
  %645 = vmatprep.subr.bf16.mxu0 0
  %646 = vmatpush1.bf16.msra.mxu0 0
  %647 = vmatprep.subr.bf16.mxu0 0
  %648 = vmatpush1.bf16.msra.mxu0 0
  %649 = vmatprep.subr.bf16.mxu0 0
  %650 = vmatpush1.bf16.msra.mxu0 0
  %651 = vmatprep.subr.bf16.mxu0 0
  %652 = vmatpush1.bf16.msra.mxu0 0
  %653 = vmatprep.subr.bf16.mxu0 0
  %654 = vmatpush1.bf16.msra.mxu0 0
  %655 = vmatprep.subr.bf16.mxu0 0
  %656 = vmatpush1.bf16.msra.mxu0 %v141
  %657 = vmatprep.subr.bf16.mxu0 0
  %658 = vmatpush1.bf16.msra.mxu0 %v140
  %659 = vmatprep.subr.bf16.mxu0 0
  %660 = vmatpush2.bf16.msra.mxu0 0
  %661 = vmatprep.subr.bf16.mxu0 0
  %662 = vmatpush2.bf16.msra.mxu0 0
  %663 = vmatprep.subr.bf16.mxu0 0
  %664 = vmatpush2.bf16.msra.mxu0 0
  %665 = vmatprep.subr.bf16.mxu0 0
  %666 = vmatpush2.bf16.msra.mxu0 0
  %667 = vmatprep.subr.bf16.mxu0 0
  %668 = vmatpush2.bf16.msra.mxu0 0
  %669 = vmatprep.subr.bf16.mxu0 0
  %670 = vmatpush2.bf16.msra.mxu0 0
  %671 = vmatprep.subr.bf16.mxu0 0
  %672 = vmatpush2.bf16.msra.mxu0 0
  %673 = vmatprep.subr.bf16.mxu0 0
  %674 = vmatpush2.bf16.msra.mxu0 0
  %675 = vmatprep.mubr.bf16.mxu0 0
  %676 = vmatmul.mubr.bf16.gmra.mxu0 %v641
  %v677 = vpop.f32.mrf.mxu0
  %v678 = vadd.f32 0.0, %v677
  %v679 = vpop.f32.mrf.mxu0
  %v680 = vpop.f32.mrf.mxu0
  %v681 = vpop.f32.mrf.mxu0
  %682 = vdwg.mxu0
  %v683 = vadd.f32 %v634, %v678
  %v684 = vxor.u32 %v683, 2147483648
  %v685 = vmul.f32 %v684, 1.442695
  %v686 = vpow.pop %v685
  %v687 = vadd.f32 %v686, 1.0
  %v688 = vrcp.pop %v687
  %v689 = vmul.f32 1.0, %v688
  %691 = vrot.lane.b32.xlu0 %v678, 96
  %v692 = vpop.permute.xlu0 %691
  %v694 = vadd.f32 %v636, %v692
  %v695 = vxor.u32 %v694, 2147483648
  %v696 = vmul.f32 %v695, 1.442695
  %v697 = vpow.pop %v696
  %v698 = vadd.f32 %v697, 1.0
  %v699 = vrcp.pop %v698
  %v700 = vmul.f32 1.0, %v699
  %v701 = vadd.f32 %v678, %v208
  %703 = vrot.lane.b32.xlu0 %v701, 64
  %v704 = vpop.permute.xlu0 %703
  %v706 = vmul.f32 %v689, %v704
  %v707 = vadd.f32 %v638, %v706
  %v708 = vtanh.pop %v707
  %v709 = vsub.f32 1.0, %v700
  %v710 = vmul.f32 %v709, %v708
  %v711 = vmul.f32 %v700, %v548
  %v712 = vadd.f32 %v710, %v711
  %s713 = scalar_lea.vmem %s3, 24
  %714 = vst.msk [vmem:[%s713] sm:$0xff] %vm44, %v632
  %s715 = scalar_lea.vmem %s3, 96
  %716 = vst.msk [vmem:[%s715] sm:$0xff] %vm44, %v712
  %s717 = scalar_lea.vmem %s0, 32
  %v718 = vld [vmem:[%s717] sm:$0xff]
  %s719 = scalar_lea.vmem %s0, 96
  %v720 = vld [vmem:[%s719] sm:$0xff]
  %s721 = scalar_lea.vmem %s0, 160
  %v722 = vld [vmem:[%s721] sm:$0xff]
  %v723 = vpack.c.bf16 %v632, %v632
  %v725 = vsel %vm44, %v723, 0
  %727 = vmatprep.subr.bf16.mxu0 0
  %728 = vmatpush1.bf16.msra.mxu0 0
  %729 = vmatprep.subr.bf16.mxu0 0
  %730 = vmatpush1.bf16.msra.mxu0 0
  %731 = vmatprep.subr.bf16.mxu0 0
  %732 = vmatpush1.bf16.msra.mxu0 0
  %733 = vmatprep.subr.bf16.mxu0 0
  %734 = vmatpush1.bf16.msra.mxu0 0
  %735 = vmatprep.subr.bf16.mxu0 0
  %736 = vmatpush1.bf16.msra.mxu0 0
  %737 = vmatprep.subr.bf16.mxu0 0
  %738 = vmatpush1.bf16.msra.mxu0 0
  %739 = vmatprep.subr.bf16.mxu0 0
  %740 = vmatpush1.bf16.msra.mxu0 %v41
  %741 = vmatprep.subr.bf16.mxu0 0
  %742 = vmatpush1.bf16.msra.mxu0 %v40
  %743 = vmatprep.subr.bf16.mxu0 0
  %744 = vmatpush2.bf16.msra.mxu0 0
  %745 = vmatprep.subr.bf16.mxu0 0
  %746 = vmatpush2.bf16.msra.mxu0 0
  %747 = vmatprep.subr.bf16.mxu0 0
  %748 = vmatpush2.bf16.msra.mxu0 0
  %749 = vmatprep.subr.bf16.mxu0 0
  %750 = vmatpush2.bf16.msra.mxu0 0
  %751 = vmatprep.subr.bf16.mxu0 0
  %752 = vmatpush2.bf16.msra.mxu0 0
  %753 = vmatprep.subr.bf16.mxu0 0
  %754 = vmatpush2.bf16.msra.mxu0 0
  %755 = vmatprep.subr.bf16.mxu0 0
  %756 = vmatpush2.bf16.msra.mxu0 0
  %757 = vmatprep.subr.bf16.mxu0 0
  %758 = vmatpush2.bf16.msra.mxu0 0
  %759 = vmatprep.mubr.bf16.mxu0 0
  %760 = vmatmul.mubr.bf16.gmra.mxu0 %v725
  %v761 = vpop.f32.mrf.mxu0
  %v762 = vadd.f32 0.0, %v761
  %v763 = vpop.f32.mrf.mxu0
  %v764 = vpop.f32.mrf.mxu0
  %v765 = vpop.f32.mrf.mxu0
  %766 = vdwg.mxu0
  %v767 = vadd.f32 %v718, %v762
  %v768 = vxor.u32 %v767, 2147483648
  %v769 = vmul.f32 %v768, 1.442695
  %v770 = vpow.pop %v769
  %v771 = vadd.f32 %v770, 1.0
  %v772 = vrcp.pop %v771
  %v773 = vmul.f32 1.0, %v772
  %775 = vrot.lane.b32.xlu0 %v762, 96
  %v776 = vpop.permute.xlu0 %775
  %v778 = vadd.f32 %v720, %v776
  %v779 = vxor.u32 %v778, 2147483648
  %v780 = vmul.f32 %v779, 1.442695
  %v781 = vpow.pop %v780
  %v782 = vadd.f32 %v781, 1.0
  %v783 = vrcp.pop %v782
  %v784 = vmul.f32 1.0, %v783
  %v785 = vadd.f32 %v762, %v112
  %787 = vrot.lane.b32.xlu0 %v785, 64
  %v788 = vpop.permute.xlu0 %787
  %v790 = vmul.f32 %v773, %v788
  %v791 = vadd.f32 %v722, %v790
  %v792 = vtanh.pop %v791
  %v793 = vsub.f32 1.0, %v784
  %v794 = vmul.f32 %v793, %v792
  %v795 = vmul.f32 %v784, %v632
  %v796 = vadd.f32 %v794, %v795
  %s797 = scalar_lea.vmem %s0, 216
  %v798 = vld [vmem:[%s797] sm:$0xff]
  %s799 = scalar_lea.vmem %s0, 280
  %v800 = vld [vmem:[%s799] sm:$0xff]
  %s801 = scalar_lea.vmem %s0, 344
  %v802 = vld [vmem:[%s801] sm:$0xff]
  %v803 = vpack.c.bf16 %v712, %v712
  %v805 = vsel %vm44, %v803, 0
  %807 = vmatprep.subr.bf16.mxu0 0
  %808 = vmatpush1.bf16.msra.mxu0 0
  %809 = vmatprep.subr.bf16.mxu0 0
  %810 = vmatpush1.bf16.msra.mxu0 0
  %811 = vmatprep.subr.bf16.mxu0 0
  %812 = vmatpush1.bf16.msra.mxu0 0
  %813 = vmatprep.subr.bf16.mxu0 0
  %814 = vmatpush1.bf16.msra.mxu0 0
  %815 = vmatprep.subr.bf16.mxu0 0
  %816 = vmatpush1.bf16.msra.mxu0 0
  %817 = vmatprep.subr.bf16.mxu0 0
  %818 = vmatpush1.bf16.msra.mxu0 0
  %819 = vmatprep.subr.bf16.mxu0 0
  %820 = vmatpush1.bf16.msra.mxu0 %v141
  %821 = vmatprep.subr.bf16.mxu0 0
  %822 = vmatpush1.bf16.msra.mxu0 %v140
  %823 = vmatprep.subr.bf16.mxu0 0
  %824 = vmatpush2.bf16.msra.mxu0 0
  %825 = vmatprep.subr.bf16.mxu0 0
  %826 = vmatpush2.bf16.msra.mxu0 0
  %827 = vmatprep.subr.bf16.mxu0 0
  %828 = vmatpush2.bf16.msra.mxu0 0
  %829 = vmatprep.subr.bf16.mxu0 0
  %830 = vmatpush2.bf16.msra.mxu0 0
  %831 = vmatprep.subr.bf16.mxu0 0
  %832 = vmatpush2.bf16.msra.mxu0 0
  %833 = vmatprep.subr.bf16.mxu0 0
  %834 = vmatpush2.bf16.msra.mxu0 0
  %835 = vmatprep.subr.bf16.mxu0 0
  %836 = vmatpush2.bf16.msra.mxu0 0
  %837 = vmatprep.subr.bf16.mxu0 0
  %838 = vmatpush2.bf16.msra.mxu0 0
  %839 = vmatprep.mubr.bf16.mxu0 0
  %840 = vmatmul.mubr.bf16.gmra.mxu0 %v805
  %v841 = vpop.f32.mrf.mxu0
  %v842 = vadd.f32 0.0, %v841
  %v843 = vpop.f32.mrf.mxu0
  %v844 = vpop.f32.mrf.mxu0
  %v845 = vpop.f32.mrf.mxu0
  %846 = vdwg.mxu0
  %v847 = vadd.f32 %v798, %v842
  %v848 = vxor.u32 %v847, 2147483648
  %v849 = vmul.f32 %v848, 1.442695
  %v850 = vpow.pop %v849
  %v851 = vadd.f32 %v850, 1.0
  %v852 = vrcp.pop %v851
  %v853 = vmul.f32 1.0, %v852
  %855 = vrot.lane.b32.xlu0 %v842, 96
  %v856 = vpop.permute.xlu0 %855
  %v858 = vadd.f32 %v800, %v856
  %v859 = vxor.u32 %v858, 2147483648
  %v860 = vmul.f32 %v859, 1.442695
  %v861 = vpow.pop %v860
  %v862 = vadd.f32 %v861, 1.0
  %v863 = vrcp.pop %v862
  %v864 = vmul.f32 1.0, %v863
  %v865 = vadd.f32 %v842, %v208
  %867 = vrot.lane.b32.xlu0 %v865, 64
  %v868 = vpop.permute.xlu0 %867
  %v870 = vmul.f32 %v853, %v868
  %v871 = vadd.f32 %v802, %v870
  %v872 = vtanh.pop %v871
  %v873 = vsub.f32 1.0, %v864
  %v874 = vmul.f32 %v873, %v872
  %v875 = vmul.f32 %v864, %v712
  %v876 = vadd.f32 %v874, %v875
  %s877 = scalar_lea.vmem %s3, 32
  %878 = vst.msk [vmem:[%s877] sm:$0xff] %vm44, %v796
  %s879 = scalar_lea.vmem %s3, 88
  %880 = vst.msk [vmem:[%s879] sm:$0xff] %vm44, %v876
  %s881 = scalar_lea.vmem %s0, 40
  %v882 = vld [vmem:[%s881] sm:$0xff]
  %s883 = scalar_lea.vmem %s0, 104
  %v884 = vld [vmem:[%s883] sm:$0xff]
  %s885 = scalar_lea.vmem %s0, 168
  %v886 = vld [vmem:[%s885] sm:$0xff]
  %v887 = vpack.c.bf16 %v796, %v796
  %v889 = vsel %vm44, %v887, 0
  %891 = vmatprep.subr.bf16.mxu0 0
  %892 = vmatpush1.bf16.msra.mxu0 0
  %893 = vmatprep.subr.bf16.mxu0 0
  %894 = vmatpush1.bf16.msra.mxu0 0
  %895 = vmatprep.subr.bf16.mxu0 0
  %896 = vmatpush1.bf16.msra.mxu0 0
  %897 = vmatprep.subr.bf16.mxu0 0
  %898 = vmatpush1.bf16.msra.mxu0 0
  %899 = vmatprep.subr.bf16.mxu0 0
  %900 = vmatpush1.bf16.msra.mxu0 0
  %901 = vmatprep.subr.bf16.mxu0 0
  %902 = vmatpush1.bf16.msra.mxu0 0
  %903 = vmatprep.subr.bf16.mxu0 0
  %904 = vmatpush1.bf16.msra.mxu0 %v41
  %905 = vmatprep.subr.bf16.mxu0 0
  %906 = vmatpush1.bf16.msra.mxu0 %v40
  %907 = vmatprep.subr.bf16.mxu0 0
  %908 = vmatpush2.bf16.msra.mxu0 0
  %909 = vmatprep.subr.bf16.mxu0 0
  %910 = vmatpush2.bf16.msra.mxu0 0
  %911 = vmatprep.subr.bf16.mxu0 0
  %912 = vmatpush2.bf16.msra.mxu0 0
  %913 = vmatprep.subr.bf16.mxu0 0
  %914 = vmatpush2.bf16.msra.mxu0 0
  %915 = vmatprep.subr.bf16.mxu0 0
  %916 = vmatpush2.bf16.msra.mxu0 0
  %917 = vmatprep.subr.bf16.mxu0 0
  %918 = vmatpush2.bf16.msra.mxu0 0
  %919 = vmatprep.subr.bf16.mxu0 0
  %920 = vmatpush2.bf16.msra.mxu0 0
  %921 = vmatprep.subr.bf16.mxu0 0
  %922 = vmatpush2.bf16.msra.mxu0 0
  %923 = vmatprep.mubr.bf16.mxu0 0
  %924 = vmatmul.mubr.bf16.gmra.mxu0 %v889
  %v925 = vpop.f32.mrf.mxu0
  %v926 = vadd.f32 0.0, %v925
  %v927 = vpop.f32.mrf.mxu0
  %v928 = vpop.f32.mrf.mxu0
  %v929 = vpop.f32.mrf.mxu0
  %930 = vdwg.mxu0
  %v931 = vadd.f32 %v882, %v926
  %v932 = vxor.u32 %v931, 2147483648
  %v933 = vmul.f32 %v932, 1.442695
  %v934 = vpow.pop %v933
  %v935 = vadd.f32 %v934, 1.0
  %v936 = vrcp.pop %v935
  %v937 = vmul.f32 1.0, %v936
  %939 = vrot.lane.b32.xlu0 %v926, 96
  %v940 = vpop.permute.xlu0 %939
  %v942 = vadd.f32 %v884, %v940
  %v943 = vxor.u32 %v942, 2147483648
  %v944 = vmul.f32 %v943, 1.442695
  %v945 = vpow.pop %v944
  %v946 = vadd.f32 %v945, 1.0
  %v947 = vrcp.pop %v946
  %v948 = vmul.f32 1.0, %v947
  %v949 = vadd.f32 %v926, %v112
  %951 = vrot.lane.b32.xlu0 %v949, 64
  %v952 = vpop.permute.xlu0 %951
  %v954 = vmul.f32 %v937, %v952
  %v955 = vadd.f32 %v886, %v954
  %v956 = vtanh.pop %v955
  %v957 = vsub.f32 1.0, %v948
  %v958 = vmul.f32 %v957, %v956
  %v959 = vmul.f32 %v948, %v796
  %v960 = vadd.f32 %v958, %v959
  %s961 = scalar_lea.vmem %s0, 208
  %v962 = vld [vmem:[%s961] sm:$0xff]
  %s963 = scalar_lea.vmem %s0, 272
  %v964 = vld [vmem:[%s963] sm:$0xff]
  %s965 = scalar_lea.vmem %s0, 336
  %v966 = vld [vmem:[%s965] sm:$0xff]
  %v967 = vpack.c.bf16 %v876, %v876
  %v969 = vsel %vm44, %v967, 0
  %971 = vmatprep.subr.bf16.mxu0 0
  %972 = vmatpush1.bf16.msra.mxu0 0
  %973 = vmatprep.subr.bf16.mxu0 0
  %974 = vmatpush1.bf16.msra.mxu0 0
  %975 = vmatprep.subr.bf16.mxu0 0
  %976 = vmatpush1.bf16.msra.mxu0 0
  %977 = vmatprep.subr.bf16.mxu0 0
  %978 = vmatpush1.bf16.msra.mxu0 0
  %979 = vmatprep.subr.bf16.mxu0 0
  %980 = vmatpush1.bf16.msra.mxu0 0
  %981 = vmatprep.subr.bf16.mxu0 0
  %982 = vmatpush1.bf16.msra.mxu0 0
  %983 = vmatprep.subr.bf16.mxu0 0
  %984 = vmatpush1.bf16.msra.mxu0 %v141
  %985 = vmatprep.subr.bf16.mxu0 0
  %986 = vmatpush1.bf16.msra.mxu0 %v140
  %987 = vmatprep.subr.bf16.mxu0 0
  %988 = vmatpush2.bf16.msra.mxu0 0
  %989 = vmatprep.subr.bf16.mxu0 0
  %990 = vmatpush2.bf16.msra.mxu0 0
  %991 = vmatprep.subr.bf16.mxu0 0
  %992 = vmatpush2.bf16.msra.mxu0 0
  %993 = vmatprep.subr.bf16.mxu0 0
  %994 = vmatpush2.bf16.msra.mxu0 0
  %995 = vmatprep.subr.bf16.mxu0 0
  %996 = vmatpush2.bf16.msra.mxu0 0
  %997 = vmatprep.subr.bf16.mxu0 0
  %998 = vmatpush2.bf16.msra.mxu0 0
  %999 = vmatprep.subr.bf16.mxu0 0
  %1000 = vmatpush2.bf16.msra.mxu0 0
  %1001 = vmatprep.subr.bf16.mxu0 0
  %1002 = vmatpush2.bf16.msra.mxu0 0
  %1003 = vmatprep.mubr.bf16.mxu0 0
  %1004 = vmatmul.mubr.bf16.gmra.mxu0 %v969
  %v1005 = vpop.f32.mrf.mxu0
  %v1006 = vadd.f32 0.0, %v1005
  %v1007 = vpop.f32.mrf.mxu0
  %v1008 = vpop.f32.mrf.mxu0
  %v1009 = vpop.f32.mrf.mxu0
  %1010 = vdwg.mxu0
  %v1011 = vadd.f32 %v962, %v1006
  %v1012 = vxor.u32 %v1011, 2147483648
  %v1013 = vmul.f32 %v1012, 1.442695
  %v1014 = vpow.pop %v1013
  %v1015 = vadd.f32 %v1014, 1.0
  %v1016 = vrcp.pop %v1015
  %v1017 = vmul.f32 1.0, %v1016
  %1019 = vrot.lane.b32.xlu0 %v1006, 96
  %v1020 = vpop.permute.xlu0 %1019
  %v1022 = vadd.f32 %v964, %v1020
  %v1023 = vxor.u32 %v1022, 2147483648
  %v1024 = vmul.f32 %v1023, 1.442695
  %v1025 = vpow.pop %v1024
  %v1026 = vadd.f32 %v1025, 1.0
  %v1027 = vrcp.pop %v1026
  %v1028 = vmul.f32 1.0, %v1027
  %v1029 = vadd.f32 %v1006, %v208
  %1031 = vrot.lane.b32.xlu0 %v1029, 64
  %v1032 = vpop.permute.xlu0 %1031
  %v1034 = vmul.f32 %v1017, %v1032
  %v1035 = vadd.f32 %v966, %v1034
  %v1036 = vtanh.pop %v1035
  %v1037 = vsub.f32 1.0, %v1028
  %v1038 = vmul.f32 %v1037, %v1036
  %v1039 = vmul.f32 %v1028, %v876
  %v1040 = vadd.f32 %v1038, %v1039
  %s1041 = scalar_lea.vmem %s3, 40
  %1042 = vst.msk [vmem:[%s1041] sm:$0xff] %vm44, %v960
  %s1043 = scalar_lea.vmem %s3, 80
  %1044 = vst.msk [vmem:[%s1043] sm:$0xff] %vm44, %v1040
  %s1045 = scalar_lea.vmem %s0, 48
  %v1046 = vld [vmem:[%s1045] sm:$0xff]
  %s1047 = scalar_lea.vmem %s0, 112
  %v1048 = vld [vmem:[%s1047] sm:$0xff]
  %s1049 = scalar_lea.vmem %s0, 176
  %v1050 = vld [vmem:[%s1049] sm:$0xff]
  %v1051 = vpack.c.bf16 %v960, %v960
  %v1053 = vsel %vm44, %v1051, 0
  %1055 = vmatprep.subr.bf16.mxu0 0
  %1056 = vmatpush1.bf16.msra.mxu0 0
  %1057 = vmatprep.subr.bf16.mxu0 0
  %1058 = vmatpush1.bf16.msra.mxu0 0
  %1059 = vmatprep.subr.bf16.mxu0 0
  %1060 = vmatpush1.bf16.msra.mxu0 0
  %1061 = vmatprep.subr.bf16.mxu0 0
  %1062 = vmatpush1.bf16.msra.mxu0 0
  %1063 = vmatprep.subr.bf16.mxu0 0
  %1064 = vmatpush1.bf16.msra.mxu0 0
  %1065 = vmatprep.subr.bf16.mxu0 0
  %1066 = vmatpush1.bf16.msra.mxu0 0
  %1067 = vmatprep.subr.bf16.mxu0 0
  %1068 = vmatpush1.bf16.msra.mxu0 %v41
  %1069 = vmatprep.subr.bf16.mxu0 0
  %1070 = vmatpush1.bf16.msra.mxu0 %v40
  %1071 = vmatprep.subr.bf16.mxu0 0
  %1072 = vmatpush2.bf16.msra.mxu0 0
  %1073 = vmatprep.subr.bf16.mxu0 0
  %1074 = vmatpush2.bf16.msra.mxu0 0
  %1075 = vmatprep.subr.bf16.mxu0 0
  %1076 = vmatpush2.bf16.msra.mxu0 0
  %1077 = vmatprep.subr.bf16.mxu0 0
  %1078 = vmatpush2.bf16.msra.mxu0 0
  %1079 = vmatprep.subr.bf16.mxu0 0
  %1080 = vmatpush2.bf16.msra.mxu0 0
  %1081 = vmatprep.subr.bf16.mxu0 0
  %1082 = vmatpush2.bf16.msra.mxu0 0
  %1083 = vmatprep.subr.bf16.mxu0 0
  %1084 = vmatpush2.bf16.msra.mxu0 0
  %1085 = vmatprep.subr.bf16.mxu0 0
  %1086 = vmatpush2.bf16.msra.mxu0 0
  %1087 = vmatprep.mubr.bf16.mxu0 0
  %1088 = vmatmul.mubr.bf16.gmra.mxu0 %v1053
  %v1089 = vpop.f32.mrf.mxu0
  %v1090 = vadd.f32 0.0, %v1089
  %v1091 = vpop.f32.mrf.mxu0
  %v1092 = vpop.f32.mrf.mxu0
  %v1093 = vpop.f32.mrf.mxu0
  %1094 = vdwg.mxu0
  %v1095 = vadd.f32 %v1046, %v1090
  %v1096 = vxor.u32 %v1095, 2147483648
  %v1097 = vmul.f32 %v1096, 1.442695
  %v1098 = vpow.pop %v1097
  %v1099 = vadd.f32 %v1098, 1.0
  %v1100 = vrcp.pop %v1099
  %v1101 = vmul.f32 1.0, %v1100
  %1103 = vrot.lane.b32.xlu0 %v1090, 96
  %v1104 = vpop.permute.xlu0 %1103
  %v1106 = vadd.f32 %v1048, %v1104
  %v1107 = vxor.u32 %v1106, 2147483648
  %v1108 = vmul.f32 %v1107, 1.442695
  %v1109 = vpow.pop %v1108
  %v1110 = vadd.f32 %v1109, 1.0
  %v1111 = vrcp.pop %v1110
  %v1112 = vmul.f32 1.0, %v1111
  %v1113 = vadd.f32 %v1090, %v112
  %1115 = vrot.lane.b32.xlu0 %v1113, 64
  %v1116 = vpop.permute.xlu0 %1115
  %v1118 = vmul.f32 %v1101, %v1116
  %v1119 = vadd.f32 %v1050, %v1118
  %v1120 = vtanh.pop %v1119
  %v1121 = vsub.f32 1.0, %v1112
  %v1122 = vmul.f32 %v1121, %v1120
  %v1123 = vmul.f32 %v1112, %v960
  %v1124 = vadd.f32 %v1122, %v1123
  %s1125 = scalar_lea.vmem %s0, 200
  %v1126 = vld [vmem:[%s1125] sm:$0xff]
  %s1127 = scalar_lea.vmem %s0, 264
  %v1128 = vld [vmem:[%s1127] sm:$0xff]
  %s1129 = scalar_lea.vmem %s0, 328
  %v1130 = vld [vmem:[%s1129] sm:$0xff]
  %v1131 = vpack.c.bf16 %v1040, %v1040
  %v1133 = vsel %vm44, %v1131, 0
  %1135 = vmatprep.subr.bf16.mxu0 0
  %1136 = vmatpush1.bf16.msra.mxu0 0
  %1137 = vmatprep.subr.bf16.mxu0 0
  %1138 = vmatpush1.bf16.msra.mxu0 0
  %1139 = vmatprep.subr.bf16.mxu0 0
  %1140 = vmatpush1.bf16.msra.mxu0 0
  %1141 = vmatprep.subr.bf16.mxu0 0
  %1142 = vmatpush1.bf16.msra.mxu0 0
  %1143 = vmatprep.subr.bf16.mxu0 0
  %1144 = vmatpush1.bf16.msra.mxu0 0
  %1145 = vmatprep.subr.bf16.mxu0 0
  %1146 = vmatpush1.bf16.msra.mxu0 0
  %1147 = vmatprep.subr.bf16.mxu0 0
  %1148 = vmatpush1.bf16.msra.mxu0 %v141
  %1149 = vmatprep.subr.bf16.mxu0 0
  %1150 = vmatpush1.bf16.msra.mxu0 %v140
  %1151 = vmatprep.subr.bf16.mxu0 0
  %1152 = vmatpush2.bf16.msra.mxu0 0
  %1153 = vmatprep.subr.bf16.mxu0 0
  %1154 = vmatpush2.bf16.msra.mxu0 0
  %1155 = vmatprep.subr.bf16.mxu0 0
  %1156 = vmatpush2.bf16.msra.mxu0 0
  %1157 = vmatprep.subr.bf16.mxu0 0
  %1158 = vmatpush2.bf16.msra.mxu0 0
  %1159 = vmatprep.subr.bf16.mxu0 0
  %1160 = vmatpush2.bf16.msra.mxu0 0
  %1161 = vmatprep.subr.bf16.mxu0 0
  %1162 = vmatpush2.bf16.msra.mxu0 0
  %1163 = vmatprep.subr.bf16.mxu0 0
  %1164 = vmatpush2.bf16.msra.mxu0 0
  %1165 = vmatprep.subr.bf16.mxu0 0
  %1166 = vmatpush2.bf16.msra.mxu0 0
  %1167 = vmatprep.mubr.bf16.mxu0 0
  %1168 = vmatmul.mubr.bf16.gmra.mxu0 %v1133
  %v1169 = vpop.f32.mrf.mxu0
  %v1170 = vadd.f32 0.0, %v1169
  %v1171 = vpop.f32.mrf.mxu0
  %v1172 = vpop.f32.mrf.mxu0
  %v1173 = vpop.f32.mrf.mxu0
  %1174 = vdwg.mxu0
  %v1175 = vadd.f32 %v1126, %v1170
  %v1176 = vxor.u32 %v1175, 2147483648
  %v1177 = vmul.f32 %v1176, 1.442695
  %v1178 = vpow.pop %v1177
  %v1179 = vadd.f32 %v1178, 1.0
  %v1180 = vrcp.pop %v1179
  %v1181 = vmul.f32 1.0, %v1180
  %1183 = vrot.lane.b32.xlu0 %v1170, 96
  %v1184 = vpop.permute.xlu0 %1183
  %v1186 = vadd.f32 %v1128, %v1184
  %v1187 = vxor.u32 %v1186, 2147483648
  %v1188 = vmul.f32 %v1187, 1.442695
  %v1189 = vpow.pop %v1188
  %v1190 = vadd.f32 %v1189, 1.0
  %v1191 = vrcp.pop %v1190
  %v1192 = vmul.f32 1.0, %v1191
  %v1193 = vadd.f32 %v1170, %v208
  %1195 = vrot.lane.b32.xlu0 %v1193, 64
  %v1196 = vpop.permute.xlu0 %1195
  %v1198 = vmul.f32 %v1181, %v1196
  %v1199 = vadd.f32 %v1130, %v1198
  %v1200 = vtanh.pop %v1199
  %v1201 = vsub.f32 1.0, %v1192
  %v1202 = vmul.f32 %v1201, %v1200
  %v1203 = vmul.f32 %v1192, %v1040
  %v1204 = vadd.f32 %v1202, %v1203
  %s1205 = scalar_lea.vmem %s3, 48
  %1206 = vst.msk [vmem:[%s1205] sm:$0xff] %vm44, %v1124
  %s1207 = scalar_lea.vmem %s3, 72
  %1208 = vst.msk [vmem:[%s1207] sm:$0xff] %vm44, %v1204
  %s1209 = scalar_lea.vmem %s0, 56
  %v1210 = vld [vmem:[%s1209] sm:$0xff]
  %s1211 = scalar_lea.vmem %s0, 120
  %v1212 = vld [vmem:[%s1211] sm:$0xff]
  %s1213 = scalar_lea.vmem %s0, 184
  %v1214 = vld [vmem:[%s1213] sm:$0xff]
  %v1215 = vpack.c.bf16 %v1124, %v1124
  %v1217 = vsel %vm44, %v1215, 0
  %1219 = vmatprep.subr.bf16.mxu0 0
  %1220 = vmatpush1.bf16.msra.mxu0 0
  %1221 = vmatprep.subr.bf16.mxu0 0
  %1222 = vmatpush1.bf16.msra.mxu0 0
  %1223 = vmatprep.subr.bf16.mxu0 0
  %1224 = vmatpush1.bf16.msra.mxu0 0
  %1225 = vmatprep.subr.bf16.mxu0 0
  %1226 = vmatpush1.bf16.msra.mxu0 0
  %1227 = vmatprep.subr.bf16.mxu0 0
  %1228 = vmatpush1.bf16.msra.mxu0 0
  %1229 = vmatprep.subr.bf16.mxu0 0
  %1230 = vmatpush1.bf16.msra.mxu0 0
  %1231 = vmatprep.subr.bf16.mxu0 0
  %1232 = vmatpush1.bf16.msra.mxu0 %v41
  %1233 = vmatprep.subr.bf16.mxu0 0
  %1234 = vmatpush1.bf16.msra.mxu0 %v40
  %1235 = vmatprep.subr.bf16.mxu0 0
  %1236 = vmatpush2.bf16.msra.mxu0 0
  %1237 = vmatprep.subr.bf16.mxu0 0
  %1238 = vmatpush2.bf16.msra.mxu0 0
  %1239 = vmatprep.subr.bf16.mxu0 0
  %1240 = vmatpush2.bf16.msra.mxu0 0
  %1241 = vmatprep.subr.bf16.mxu0 0
  %1242 = vmatpush2.bf16.msra.mxu0 0
  %1243 = vmatprep.subr.bf16.mxu0 0
  %1244 = vmatpush2.bf16.msra.mxu0 0
  %1245 = vmatprep.subr.bf16.mxu0 0
  %1246 = vmatpush2.bf16.msra.mxu0 0
  %1247 = vmatprep.subr.bf16.mxu0 0
  %1248 = vmatpush2.bf16.msra.mxu0 0
  %1249 = vmatprep.subr.bf16.mxu0 0
  %1250 = vmatpush2.bf16.msra.mxu0 0
  %1251 = vmatprep.mubr.bf16.mxu0 0
  %1252 = vmatmul.mubr.bf16.gmra.mxu0 %v1217
  %v1253 = vpop.f32.mrf.mxu0
  %v1254 = vadd.f32 0.0, %v1253
  %v1255 = vpop.f32.mrf.mxu0
  %v1256 = vpop.f32.mrf.mxu0
  %v1257 = vpop.f32.mrf.mxu0
  %1258 = vdwg.mxu0
  %v1259 = vadd.f32 %v1210, %v1254
  %v1260 = vxor.u32 %v1259, 2147483648
  %v1261 = vmul.f32 %v1260, 1.442695
  %v1262 = vpow.pop %v1261
  %v1263 = vadd.f32 %v1262, 1.0
  %v1264 = vrcp.pop %v1263
  %v1265 = vmul.f32 1.0, %v1264
  %1267 = vrot.lane.b32.xlu0 %v1254, 96
  %v1268 = vpop.permute.xlu0 %1267
  %v1270 = vadd.f32 %v1212, %v1268
  %v1271 = vxor.u32 %v1270, 2147483648
  %v1272 = vmul.f32 %v1271, 1.442695
  %v1273 = vpow.pop %v1272
  %v1274 = vadd.f32 %v1273, 1.0
  %v1275 = vrcp.pop %v1274
  %v1276 = vmul.f32 1.0, %v1275
  %v1277 = vadd.f32 %v1254, %v112
  %1279 = vrot.lane.b32.xlu0 %v1277, 64
  %v1280 = vpop.permute.xlu0 %1279
  %v1282 = vmul.f32 %v1265, %v1280
  %v1283 = vadd.f32 %v1214, %v1282
  %v1284 = vtanh.pop %v1283
  %v1285 = vsub.f32 1.0, %v1276
  %v1286 = vmul.f32 %v1285, %v1284
  %v1287 = vmul.f32 %v1276, %v1124
  %v1288 = vadd.f32 %v1286, %v1287
  %s1289 = scalar_lea.vmem %s0, 192
  %v1290 = vld [vmem:[%s1289] sm:$0xff]
  %s1291 = scalar_lea.vmem %s0, 256
  %v1292 = vld [vmem:[%s1291] sm:$0xff]
  %s1293 = scalar_lea.vmem %s0, 320
  %v1294 = vld [vmem:[%s1293] sm:$0xff]
  %v1295 = vpack.c.bf16 %v1204, %v1204
  %v1297 = vsel %vm44, %v1295, 0
  %1299 = vmatprep.subr.bf16.mxu0 0
  %1300 = vmatpush1.bf16.msra.mxu0 0
  %1301 = vmatprep.subr.bf16.mxu0 0
  %1302 = vmatpush1.bf16.msra.mxu0 0
  %1303 = vmatprep.subr.bf16.mxu0 0
  %1304 = vmatpush1.bf16.msra.mxu0 0
  %1305 = vmatprep.subr.bf16.mxu0 0
  %1306 = vmatpush1.bf16.msra.mxu0 0
  %1307 = vmatprep.subr.bf16.mxu0 0
  %1308 = vmatpush1.bf16.msra.mxu0 0
  %1309 = vmatprep.subr.bf16.mxu0 0
  %1310 = vmatpush1.bf16.msra.mxu0 0
  %1311 = vmatprep.subr.bf16.mxu0 0
  %1312 = vmatpush1.bf16.msra.mxu0 %v141
  %1313 = vmatprep.subr.bf16.mxu0 0
  %1314 = vmatpush1.bf16.msra.mxu0 %v140
  %1315 = vmatprep.subr.bf16.mxu0 0
  %1316 = vmatpush2.bf16.msra.mxu0 0
  %1317 = vmatprep.subr.bf16.mxu0 0
  %1318 = vmatpush2.bf16.msra.mxu0 0
  %1319 = vmatprep.subr.bf16.mxu0 0
  %1320 = vmatpush2.bf16.msra.mxu0 0
  %1321 = vmatprep.subr.bf16.mxu0 0
  %1322 = vmatpush2.bf16.msra.mxu0 0
  %1323 = vmatprep.subr.bf16.mxu0 0
  %1324 = vmatpush2.bf16.msra.mxu0 0
  %1325 = vmatprep.subr.bf16.mxu0 0
  %1326 = vmatpush2.bf16.msra.mxu0 0
  %1327 = vmatprep.subr.bf16.mxu0 0
  %1328 = vmatpush2.bf16.msra.mxu0 0
  %1329 = vmatprep.subr.bf16.mxu0 0
  %1330 = vmatpush2.bf16.msra.mxu0 0
  %1331 = vmatprep.mubr.bf16.mxu0 0
  %1332 = vmatmul.mubr.bf16.gmra.mxu0 %v1297
  %v1333 = vpop.f32.mrf.mxu0
  %v1334 = vadd.f32 0.0, %v1333
  %v1335 = vpop.f32.mrf.mxu0
  %v1336 = vpop.f32.mrf.mxu0
  %v1337 = vpop.f32.mrf.mxu0
  %1338 = vdwg.mxu0
  %v1339 = vadd.f32 %v1290, %v1334
  %v1340 = vxor.u32 %v1339, 2147483648
  %v1341 = vmul.f32 %v1340, 1.442695
  %v1342 = vpow.pop %v1341
  %v1343 = vadd.f32 %v1342, 1.0
  %v1344 = vrcp.pop %v1343
  %v1345 = vmul.f32 1.0, %v1344
  %1347 = vrot.lane.b32.xlu0 %v1334, 96
  %v1348 = vpop.permute.xlu0 %1347
  %v1350 = vadd.f32 %v1292, %v1348
  %v1351 = vxor.u32 %v1350, 2147483648
  %v1352 = vmul.f32 %v1351, 1.442695
  %v1353 = vpow.pop %v1352
  %v1354 = vadd.f32 %v1353, 1.0
  %v1355 = vrcp.pop %v1354
  %v1356 = vmul.f32 1.0, %v1355
  %v1357 = vadd.f32 %v1334, %v208
  %1359 = vrot.lane.b32.xlu0 %v1357, 64
  %v1360 = vpop.permute.xlu0 %1359
  %v1362 = vmul.f32 %v1345, %v1360
  %v1363 = vadd.f32 %v1294, %v1362
  %v1364 = vtanh.pop %v1363
  %v1365 = vsub.f32 1.0, %v1356
  %v1366 = vmul.f32 %v1365, %v1364
  %v1367 = vmul.f32 %v1356, %v1204
  %v1368 = vadd.f32 %v1366, %v1367
  %s1369 = scalar_lea.vmem %s3, 56
  %1370 = vst.msk [vmem:[%s1369] sm:$0xff] %vm44, %v1288
  %s1371 = scalar_lea.vmem %s3, 64
  %1372 = vst.msk [vmem:[%s1371] sm:$0xff] %vm44, %v1368
  // Predicated region
  $region14: #{encoder_forward.2} parent=0 // pred_check
    _
  $region15: #{encoder_forward.2} parent=0 // pred_check_branch
    %1374 = sbr.rel (0) target = $region17
  $region16: #{encoder_forward.2} parent=0 // pred_region
    _
  $region17: #{encoder_forward.2} parent=0 // pred_fallthru
    _
  // Predicated region
  $region18: #{encoder_forward.2} parent=0 // pred_check
    _
  $region19: #{encoder_forward.2} parent=0 // pred_check_branch
    %1376 = sbr.rel (0) target = $region21
  $region20: #{encoder_forward.2} parent=0 // pred_region
    _
  $region21: #{encoder_forward.2} parent=0 // pred_fallthru
    _

</llo_original>
